<compile_context>
chip_gen: v7x
topology: tpu7x:2x2x1
jax: 0.10.0
libtpu: 0.0.40
codegen_flags: <defaults>
</compile_context>

<pallas_src>
import functools

import numpy as np
import jax
import jax.numpy as jnp
from jax.experimental import pallas as pl
from jax.experimental.pallas import tpu as pltpu


# ----------------------------------------------------------------------------
# Host-side (compile-time constant) bilinear interpolation matrices.
# out_plane = Wh @ plane @ Ww^T reproduces
# F.interpolate(mode='bilinear', align_corners=True).  For lane-dense planes
# both factors fold into one kron matrix so the kernel does ONE 2D MXU matmul
# per level:  up_flat = plane_flat @ K,  K = kron(Wh, Ww)^T, shape (Hs*Ws, Ht*Wt).
# ----------------------------------------------------------------------------
def _bilinear_matrix_np(n_out, n_in):
    if n_out == 1 or n_in == 1:
        src = np.zeros((n_out,), np.float32)
    else:
        src = np.arange(n_out, dtype=np.float32) * ((n_in - 1) / (n_out - 1))
    i0 = np.clip(np.floor(src).astype(np.int32), 0, n_in - 1)
    i1 = np.clip(i0 + 1, 0, n_in - 1)
    w1 = (src - i0.astype(np.float32)).astype(np.float32)
    w0 = (1.0 - w1).astype(np.float32)
    mat = np.zeros((n_out, n_in), np.float32)
    rows = np.arange(n_out)
    np.add.at(mat, (rows, i0), w0)
    np.add.at(mat, (rows, i1), w1)
    return mat


def _kron_interp_matrix(hs, ws, ht, wt):
    wh = _bilinear_matrix_np(ht, hs)          # (Ht, Hs)
    ww = _bilinear_matrix_np(wt, ws)          # (Wt, Ws)
    # flat_out[n, oh*Wt+ow] = sum_{ih,iw} plane[n, ih*Ws+iw] * Wh[oh,ih] * Ww[ow,iw]
    return jnp.asarray(np.kron(wh.T, ww.T))   # (Hs*Ws, Ht*Wt), f32


# ----------------------------------------------------------------------------
# Single fused kernel: writes (loss_sod, loss_feat_distill, loss_logits_distill)
# to a (3,) SMEM output.
# Input refs: pred(B,HW) mask(B,HW) tmap(B,HtWt) kmap(HW,HtWt)
#             then per level: s(N,hsws) t(N,htwt) k(hsws,htwt)
# ----------------------------------------------------------------------------
def _srd_loss_kernel(*refs, num_levels, inv_elems, inv_planes, inv_temp, inv_batch):
    pred_ref, mask_ref, tmap_ref, kmap_ref = refs[:4]
    feat_refs = refs[4:4 + 3 * num_levels]
    o_ref = refs[-1]

    # ---- (1) structure_loss: stable BCE-with-logits + per-plane IoU --------
    # exp(-|x|) is computed once and reused for the BCE log term and sigmoid.
    x = pred_ref[...].astype(jnp.float32)                    # (B, Hs*Ws) logits
    y = mask_ref[...].astype(jnp.float32)
    e = jnp.exp(-jnp.abs(x))
    bce = jnp.maximum(x, 0.0) - x * y + jnp.log(1.0 + e)
    p = jnp.where(x >= 0.0, 1.0, e) / (1.0 + e)              # exact sigmoid
    inter = jnp.sum(p * y, axis=1, keepdims=True)            # (B, 1)
    union = jnp.sum(p + y, axis=1, keepdims=True)            # (B, 1)
    wiou = 1.0 - (inter + 1.0) / (union - inter + 1.0)
    o_ref[0] = jnp.sum(bce) * inv_elems + jnp.sum(wiou) * inv_planes

    # ---- (2) feature distillation: one lane-dense MXU matmul per level -----
    total = jnp.float32(0.0)
    for lvl in range(num_levels):
        s_ref, t_ref, k_ref = feat_refs[3 * lvl: 3 * lvl + 3]
        up = jnp.dot(s_ref[...].astype(jnp.float32), k_ref[...],
                     preferred_element_type=jnp.float32)     # (N, Ht*Wt), stays in VMEM
        d = jnp.abs(up - t_ref[...].astype(jnp.float32))
        total = total + jnp.log(jnp.sum(d))
    o_ref[1] = total * 0.005

    # ---- (3) logits distillation: fused upsample + KL(batchmean) -----------
    sn = jnp.dot(x, kmap_ref[...], preferred_element_type=jnp.float32) * inv_temp
    tn = tmap_ref[...].astype(jnp.float32) * inv_temp        # (B, Ht*Wt)
    max_s = jnp.max(sn, axis=1, keepdims=True)
    max_t = jnp.max(tn, axis=1, keepdims=True)
    es = jnp.exp(sn - max_s)
    et = jnp.exp(tn - max_t)
    zs = jnp.sum(es, axis=1, keepdims=True)
    zt = jnp.sum(et, axis=1, keepdims=True)
    lse_s = max_s + jnp.log(zs)
    lse_t = max_t + jnp.log(zt)
    # KL(p_t || q_s) per row = sum_i p_i*(t_i - s_i) + (lse_s - lse_t)
    cross = jnp.sum(et * (tn - sn), axis=1, keepdims=True) / zt
    kl = cross + (lse_s - lse_t)                             # (B, 1)
    o_ref[2] = jnp.sum(kl) * inv_batch * 0.1


def transxnet_srd_losses(student_smap1, student_features, teacher_smap1,
                         teacher_features, labels_lr, temp=2.0):
    b, c, hs, ws = student_smap1.shape
    bt, ct, ht, wt = teacher_smap1.shape
    if c != 1 or ct != 1:
        # TODO(synk): multi-channel saliency maps would need the softmax taken
        # over the flattened (C, H, W); the reference module only uses C == 1.
        raise NotImplementedError("logits distillation expects 1-channel saliency maps")

    args = [student_smap1.reshape(b * c, hs * ws),        # lane-dense rows
            labels_lr.reshape(b * c, hs * ws),
            teacher_smap1.reshape(bt * ct, ht * wt),
            _kron_interp_matrix(hs, ws, ht, wt)]
    num_levels = len(student_features)
    for s, t in zip(student_features, teacher_features):
        bs, cs, shs, sws = s.shape
        bt2, ct2, ths, tws = t.shape
        args += [s.reshape(bs * cs, shs * sws),
                 t.reshape(bt2 * ct2, ths * tws),
                 _kron_interp_matrix(shs, sws, ths, tws)]

    out = pl.pallas_call(
        functools.partial(_srd_loss_kernel,
                          num_levels=num_levels,
                          inv_elems=1.0 / float(b * c * hs * ws),
                          inv_planes=1.0 / float(b * c),
                          inv_temp=1.0 / float(temp),
                          inv_batch=1.0 / float(b)),
        out_shape=jax.ShapeDtypeStruct((3,), jnp.float32),
        out_specs=pl.BlockSpec(memory_space=pltpu.MemorySpace.SMEM),
        compiler_params=pltpu.CompilerParams(vmem_limit_bytes=32 * 1024 * 1024),
    )(*args)
    return out[0], out[1], out[2]


# ----------------------------------------------------------------------------
# TransXNet_SRD training-mode forward (loss head): one fused Pallas launch.
# ----------------------------------------------------------------------------
@jax.jit
def transxnet_srd_training_forward(student_smap1, student_features,
                                   teacher_smap1, teacher_features, labels_lr):
    loss_sod, loss_feat, loss_logits = transxnet_srd_losses(
        student_smap1, student_features, teacher_smap1, teacher_features,
        labels_lr, temp=2.0)
    return loss_sod, loss_feat, loss_logits


if __name__ == "__main__":
    key = jax.random.PRNGKey(0)
    keys = jax.random.split(key, 12)
    B, IMG = 2, 16

    # TODO(synk): the TransXNet student / TransXNet_teacher backbones are not
    # defined in the provided source; their outputs are synthesized here so the
    # SRD loss head (the specified part of the forward) can be exercised.
    student_smap1 = jax.random.normal(keys[0], (B, 1, IMG, IMG), jnp.float32)
    teacher_smap1 = jax.random.normal(keys[1], (B, 1, 2 * IMG, 2 * IMG), jnp.float32)
    labels_lr = (jax.random.uniform(keys[2], (B, 1, IMG, IMG)) > 0.5).astype(jnp.float32)

    stage_ch = (4, 8, 16, 32)
    stage_sp_s = (8, 4, 2, 2)     # student spatial sizes
    stage_sp_t = (16, 8, 4, 4)    # teacher spatial sizes (2x resolution input)
    student_features = tuple(
        jax.random.normal(keys[3 + i], (B, stage_ch[i], stage_sp_s[i], stage_sp_s[i]),
                          jnp.float32)
        for i in range(4))
    teacher_features = tuple(
        jax.random.normal(keys[7 + i], (B, stage_ch[i], stage_sp_t[i], stage_sp_t[i]),
                          jnp.float32)
        for i in range(4))

    losses = transxnet_srd_training_forward(student_smap1, student_features,
                                            teacher_smap1, teacher_features,
                                            labels_lr)
    losses = jax.block_until_ready(losses)
    print("KERNEL_OK")
</pallas_src>

<mosaic_0001>
module attributes {stable_mosaic.version = 11 : i64} {
  func.func @_srd_loss_kernel(%arg0: memref<2x256xf32, #tpu.memory_space<vmem>>, %arg1: memref<2x256xf32, #tpu.memory_space<vmem>>, %arg2: memref<2x1024xf32, #tpu.memory_space<vmem>>, %arg3: memref<256x1024xf32, #tpu.memory_space<vmem>>, %arg4: memref<8x64xf32, #tpu.memory_space<vmem>>, %arg5: memref<8x256xf32, #tpu.memory_space<vmem>>, %arg6: memref<64x256xf32, #tpu.memory_space<vmem>>, %arg7: memref<16x16xf32, #tpu.memory_space<vmem>>, %arg8: memref<16x64xf32, #tpu.memory_space<vmem>>, %arg9: memref<16x64xf32, #tpu.memory_space<vmem>>, %arg10: memref<32x4xf32, #tpu.memory_space<vmem>>, %arg11: memref<32x16xf32, #tpu.memory_space<vmem>>, %arg12: memref<4x16xf32, #tpu.memory_space<vmem>>, %arg13: memref<64x4xf32, #tpu.memory_space<vmem>>, %arg14: memref<64x16xf32, #tpu.memory_space<vmem>>, %arg15: memref<4x16xf32, #tpu.memory_space<vmem>>, %arg16: memref<3xf32, #tpu.memory_space<smem>>) attributes {dimension_semantics = [], scalar_prefetch = 0 : i64, scratch_operands = 0 : i64, tpu.core_type = #tpu.core_type<tc>} {
    %c0 = arith.constant 0 : index
    %c0_0 = arith.constant 0 : index
    %0 = vector.load %arg0[%c0, %c0_0] : memref<2x256xf32, #tpu.memory_space<vmem>>, vector<2x256xf32>
    %c0_1 = arith.constant 0 : index
    %c0_2 = arith.constant 0 : index
    %1 = vector.load %arg1[%c0_1, %c0_2] : memref<2x256xf32, #tpu.memory_space<vmem>>, vector<2x256xf32>
    %2 = math.absf %0 : vector<2x256xf32>
    %cst = arith.constant 0.000000e+00 : f32
    %3 = vector.broadcast %cst : f32 to vector<2x256xf32>
    %4 = arith.subf %3, %2 : vector<2x256xf32>
    %5 = math.exp %4 : vector<2x256xf32>
    %cst_3 = arith.constant 0.000000e+00 : f32
    %6 = vector.broadcast %cst_3 : f32 to vector<2x256xf32>
    %7 = arith.maximumf %0, %6 : vector<2x256xf32>
    %8 = arith.mulf %0, %1 : vector<2x256xf32>
    %9 = arith.subf %7, %8 : vector<2x256xf32>
    %cst_4 = arith.constant 1.000000e+00 : f32
    %10 = vector.broadcast %cst_4 : f32 to vector<2x256xf32>
    %11 = arith.addf %10, %5 : vector<2x256xf32>
    %12 = math.log %11 : vector<2x256xf32>
    %13 = arith.addf %9, %12 : vector<2x256xf32>
    %cst_5 = arith.constant 0.000000e+00 : f32
    %14 = vector.broadcast %cst_5 : f32 to vector<2x256xf32>
    %15 = arith.cmpf oge, %0, %14 : vector<2x256xf32>
    %cst_6 = arith.constant 1.000000e+00 : f32
    %16 = vector.broadcast %cst_6 : f32 to vector<2x256xf32>
    %17 = arith.select %15, %16, %5 : vector<2x256xi1>, vector<2x256xf32>
    %cst_7 = arith.constant 1.000000e+00 : f32
    %18 = vector.broadcast %cst_7 : f32 to vector<2x256xf32>
    %19 = arith.addf %18, %5 : vector<2x256xf32>
    %20 = arith.divf %17, %19 : vector<2x256xf32>
    %21 = arith.mulf %20, %1 : vector<2x256xf32>
    %cst_8 = arith.constant dense<0.000000e+00> : vector<2xf32>
    %22 = vector.multi_reduction <add>, %21, %cst_8 [1] : vector<2x256xf32> to vector<2xf32>
    %23 = vector.shape_cast %22 : vector<2xf32> to vector<2x1xf32>
    %24 = arith.addf %20, %1 : vector<2x256xf32>
    %cst_9 = arith.constant dense<0.000000e+00> : vector<2xf32>
    %25 = vector.multi_reduction <add>, %24, %cst_9 [1] : vector<2x256xf32> to vector<2xf32>
    %26 = vector.shape_cast %25 : vector<2xf32> to vector<2x1xf32>
    %cst_10 = arith.constant 1.000000e+00 : f32
    %27 = vector.broadcast %cst_10 : f32 to vector<2x1xf32>
    %28 = arith.addf %23, %27 : vector<2x1xf32>
    %29 = arith.subf %26, %23 : vector<2x1xf32>
    %cst_11 = arith.constant 1.000000e+00 : f32
    %30 = vector.broadcast %cst_11 : f32 to vector<2x1xf32>
    %31 = arith.addf %29, %30 : vector<2x1xf32>
    %32 = arith.divf %28, %31 : vector<2x1xf32>
    %cst_12 = arith.constant 1.000000e+00 : f32
    %33 = vector.broadcast %cst_12 : f32 to vector<2x1xf32>
    %34 = arith.subf %33, %32 : vector<2x1xf32>
    %35 = vector.shape_cast %13 : vector<2x256xf32> to vector<1x2x256xf32>
    %cst_13 = arith.constant dense<0.000000e+00> : vector<1xf32>
    %36 = vector.multi_reduction <add>, %35, %cst_13 [1, 2] : vector<1x2x256xf32> to vector<1xf32>
    %37 = vector.shape_cast %36 : vector<1xf32> to vector<1x1x1xf32>
    %38 = vector.extract %37[0, 0, 0] : f32 from vector<1x1x1xf32>
    %cst_14 = arith.constant 0.001953125 : f32
    %39 = arith.mulf %38, %cst_14 : f32
    %40 = vector.shape_cast %34 : vector<2x1xf32> to vector<1x2x1xf32>
    %cst_15 = arith.constant dense<0.000000e+00> : vector<1xf32>
    %41 = vector.multi_reduction <add>, %40, %cst_15 [1, 2] : vector<1x2x1xf32> to vector<1xf32>
    %42 = vector.shape_cast %41 : vector<1xf32> to vector<1x1x1xf32>
    %43 = vector.extract %42[0, 0, 0] : f32 from vector<1x1x1xf32>
    %cst_16 = arith.constant 5.000000e-01 : f32
    %44 = arith.mulf %43, %cst_16 : f32
    %45 = arith.addf %39, %44 : f32
    %c0_17 = arith.constant 0 : index
    %46 = memref.load %arg16[%c0_17] : memref<3xf32, #tpu.memory_space<smem>>
    memref.store %45, %arg16[%c0_17] : memref<3xf32, #tpu.memory_space<smem>>
    %c0_18 = arith.constant 0 : index
    %c0_19 = arith.constant 0 : index
    %47 = vector.load %arg4[%c0_18, %c0_19] : memref<8x64xf32, #tpu.memory_space<vmem>>, vector<8x64xf32>
    %c0_20 = arith.constant 0 : index
    %c0_21 = arith.constant 0 : index
    %48 = vector.load %arg6[%c0_20, %c0_21] : memref<64x256xf32, #tpu.memory_space<vmem>>, vector<64x256xf32>
    %cst_22 = arith.constant dense<0.000000e+00> : vector<8x256xf32>
    %49 = tpu.matmul %47, %48, %cst_22 {dimension_numbers = #tpu.dot_dimension_numbers<[1], [0], [0], [1], [0, 0, 1, 1], [], []>} : vector<8x64xf32>, vector<64x256xf32>, vector<8x256xf32> -> vector<8x256xf32>
    %c0_23 = arith.constant 0 : index
    %c0_24 = arith.constant 0 : index
    %50 = vector.load %arg5[%c0_23, %c0_24] : memref<8x256xf32, #tpu.memory_space<vmem>>, vector<8x256xf32>
    %51 = arith.subf %49, %50 : vector<8x256xf32>
    %52 = math.absf %51 : vector<8x256xf32>
    %53 = vector.shape_cast %52 : vector<8x256xf32> to vector<1x8x256xf32>
    %cst_25 = arith.constant dense<0.000000e+00> : vector<1xf32>
    %54 = vector.multi_reduction <add>, %53, %cst_25 [1, 2] : vector<1x8x256xf32> to vector<1xf32>
    %55 = vector.shape_cast %54 : vector<1xf32> to vector<1x1x1xf32>
    %56 = vector.extract %55[0, 0, 0] : f32 from vector<1x1x1xf32>
    %57 = math.log %56 : f32
    %cst_26 = arith.constant 0.000000e+00 : f32
    %58 = arith.addf %cst_26, %57 : f32
    %c0_27 = arith.constant 0 : index
    %c0_28 = arith.constant 0 : index
    %59 = vector.load %arg7[%c0_27, %c0_28] : memref<16x16xf32, #tpu.memory_space<vmem>>, vector<16x16xf32>
    %c0_29 = arith.constant 0 : index
    %c0_30 = arith.constant 0 : index
    %60 = vector.load %arg9[%c0_29, %c0_30] : memref<16x64xf32, #tpu.memory_space<vmem>>, vector<16x64xf32>
    %cst_31 = arith.constant dense<0.000000e+00> : vector<16x64xf32>
    %61 = tpu.matmul %59, %60, %cst_31 {dimension_numbers = #tpu.dot_dimension_numbers<[1], [0], [0], [1], [0, 0, 1, 1], [], []>} : vector<16x16xf32>, vector<16x64xf32>, vector<16x64xf32> -> vector<16x64xf32>
    %c0_32 = arith.constant 0 : index
    %c0_33 = arith.constant 0 : index
    %62 = vector.load %arg8[%c0_32, %c0_33] : memref<16x64xf32, #tpu.memory_space<vmem>>, vector<16x64xf32>
    %63 = arith.subf %61, %62 : vector<16x64xf32>
    %64 = math.absf %63 : vector<16x64xf32>
    %65 = vector.shape_cast %64 : vector<16x64xf32> to vector<1x16x64xf32>
    %cst_34 = arith.constant dense<0.000000e+00> : vector<1xf32>
    %66 = vector.multi_reduction <add>, %65, %cst_34 [1, 2] : vector<1x16x64xf32> to vector<1xf32>
    %67 = vector.shape_cast %66 : vector<1xf32> to vector<1x1x1xf32>
    %68 = vector.extract %67[0, 0, 0] : f32 from vector<1x1x1xf32>
    %69 = math.log %68 : f32
    %70 = arith.addf %58, %69 : f32
    %c0_35 = arith.constant 0 : index
    %c0_36 = arith.constant 0 : index
    %71 = vector.load %arg10[%c0_35, %c0_36] : memref<32x4xf32, #tpu.memory_space<vmem>>, vector<32x4xf32>
    %c0_37 = arith.constant 0 : index
    %c0_38 = arith.constant 0 : index
    %72 = vector.load %arg12[%c0_37, %c0_38] : memref<4x16xf32, #tpu.memory_space<vmem>>, vector<4x16xf32>
    %cst_39 = arith.constant dense<0.000000e+00> : vector<32x16xf32>
    %73 = tpu.matmul %71, %72, %cst_39 {dimension_numbers = #tpu.dot_dimension_numbers<[1], [0], [0], [1], [0, 0, 1, 1], [], []>} : vector<32x4xf32>, vector<4x16xf32>, vector<32x16xf32> -> vector<32x16xf32>
    %c0_40 = arith.constant 0 : index
    %c0_41 = arith.constant 0 : index
    %74 = vector.load %arg11[%c0_40, %c0_41] : memref<32x16xf32, #tpu.memory_space<vmem>>, vector<32x16xf32>
    %75 = arith.subf %73, %74 : vector<32x16xf32>
    %76 = math.absf %75 : vector<32x16xf32>
    %77 = vector.shape_cast %76 : vector<32x16xf32> to vector<1x32x16xf32>
    %cst_42 = arith.constant dense<0.000000e+00> : vector<1xf32>
    %78 = vector.multi_reduction <add>, %77, %cst_42 [1, 2] : vector<1x32x16xf32> to vector<1xf32>
    %79 = vector.shape_cast %78 : vector<1xf32> to vector<1x1x1xf32>
    %80 = vector.extract %79[0, 0, 0] : f32 from vector<1x1x1xf32>
    %81 = math.log %80 : f32
    %82 = arith.addf %70, %81 : f32
    %c0_43 = arith.constant 0 : index
    %c0_44 = arith.constant 0 : index
    %83 = vector.load %arg13[%c0_43, %c0_44] : memref<64x4xf32, #tpu.memory_space<vmem>>, vector<64x4xf32>
    %c0_45 = arith.constant 0 : index
    %c0_46 = arith.constant 0 : index
    %84 = vector.load %arg15[%c0_45, %c0_46] : memref<4x16xf32, #tpu.memory_space<vmem>>, vector<4x16xf32>
    %cst_47 = arith.constant dense<0.000000e+00> : vector<64x16xf32>
    %85 = tpu.matmul %83, %84, %cst_47 {dimension_numbers = #tpu.dot_dimension_numbers<[1], [0], [0], [1], [0, 0, 1, 1], [], []>} : vector<64x4xf32>, vector<4x16xf32>, vector<64x16xf32> -> vector<64x16xf32>
    %c0_48 = arith.constant 0 : index
    %c0_49 = arith.constant 0 : index
    %86 = vector.load %arg14[%c0_48, %c0_49] : memref<64x16xf32, #tpu.memory_space<vmem>>, vector<64x16xf32>
    %87 = arith.subf %85, %86 : vector<64x16xf32>
    %88 = math.absf %87 : vector<64x16xf32>
    %89 = vector.shape_cast %88 : vector<64x16xf32> to vector<1x64x16xf32>
    %cst_50 = arith.constant dense<0.000000e+00> : vector<1xf32>
    %90 = vector.multi_reduction <add>, %89, %cst_50 [1, 2] : vector<1x64x16xf32> to vector<1xf32>
    %91 = vector.shape_cast %90 : vector<1xf32> to vector<1x1x1xf32>
    %92 = vector.extract %91[0, 0, 0] : f32 from vector<1x1x1xf32>
    %93 = math.log %92 : f32
    %94 = arith.addf %82, %93 : f32
    %cst_51 = arith.constant 5.000000e-03 : f32
    %95 = arith.mulf %94, %cst_51 : f32
    %c1 = arith.constant 1 : index
    %96 = memref.load %arg16[%c1] : memref<3xf32, #tpu.memory_space<smem>>
    memref.store %95, %arg16[%c1] : memref<3xf32, #tpu.memory_space<smem>>
    %c0_52 = arith.constant 0 : index
    %c0_53 = arith.constant 0 : index
    %97 = vector.load %arg3[%c0_52, %c0_53] : memref<256x1024xf32, #tpu.memory_space<vmem>>, vector<256x1024xf32>
    %cst_54 = arith.constant dense<0.000000e+00> : vector<2x1024xf32>
    %98 = tpu.matmul %0, %97, %cst_54 {dimension_numbers = #tpu.dot_dimension_numbers<[1], [0], [0], [1], [0, 0, 1, 1], [], []>} : vector<2x256xf32>, vector<256x1024xf32>, vector<2x1024xf32> -> vector<2x1024xf32>
    %cst_55 = arith.constant 5.000000e-01 : f32
    %99 = vector.broadcast %cst_55 : f32 to vector<2x1024xf32>
    %100 = arith.mulf %98, %99 : vector<2x1024xf32>
    %c0_56 = arith.constant 0 : index
    %c0_57 = arith.constant 0 : index
    %101 = vector.load %arg2[%c0_56, %c0_57] : memref<2x1024xf32, #tpu.memory_space<vmem>>, vector<2x1024xf32>
    %cst_58 = arith.constant 5.000000e-01 : f32
    %102 = vector.broadcast %cst_58 : f32 to vector<2x1024xf32>
    %103 = arith.mulf %101, %102 : vector<2x1024xf32>
    %cst_59 = arith.constant dense<0xFF800000> : vector<2xf32>
    %104 = vector.multi_reduction <maximumf>, %100, %cst_59 [1] : vector<2x1024xf32> to vector<2xf32>
    %105 = vector.shape_cast %104 : vector<2xf32> to vector<2x1xf32>
    %cst_60 = arith.constant dense<0xFF800000> : vector<2xf32>
    %106 = vector.multi_reduction <maximumf>, %103, %cst_60 [1] : vector<2x1024xf32> to vector<2xf32>
    %107 = vector.shape_cast %106 : vector<2xf32> to vector<2x1xf32>
    %108 = vector.broadcast %105 : vector<2x1xf32> to vector<2x1024xf32>
    %109 = arith.subf %100, %108 : vector<2x1024xf32>
    %110 = math.exp %109 : vector<2x1024xf32>
    %111 = vector.broadcast %107 : vector<2x1xf32> to vector<2x1024xf32>
    %112 = arith.subf %103, %111 : vector<2x1024xf32>
    %113 = math.exp %112 : vector<2x1024xf32>
    %cst_61 = arith.constant dense<0.000000e+00> : vector<2xf32>
    %114 = vector.multi_reduction <add>, %110, %cst_61 [1] : vector<2x1024xf32> to vector<2xf32>
    %115 = vector.shape_cast %114 : vector<2xf32> to vector<2x1xf32>
    %cst_62 = arith.constant dense<0.000000e+00> : vector<2xf32>
    %116 = vector.multi_reduction <add>, %113, %cst_62 [1] : vector<2x1024xf32> to vector<2xf32>
    %117 = vector.shape_cast %116 : vector<2xf32> to vector<2x1xf32>
    %118 = math.log %115 : vector<2x1xf32>
    %119 = arith.addf %105, %118 : vector<2x1xf32>
    %120 = math.log %117 : vector<2x1xf32>
    %121 = arith.addf %107, %120 : vector<2x1xf32>
    %122 = arith.subf %103, %100 : vector<2x1024xf32>
    %123 = arith.mulf %113, %122 : vector<2x1024xf32>
    %cst_63 = arith.constant dense<0.000000e+00> : vector<2xf32>
    %124 = vector.multi_reduction <add>, %123, %cst_63 [1] : vector<2x1024xf32> to vector<2xf32>
    %125 = vector.shape_cast %124 : vector<2xf32> to vector<2x1xf32>
    %126 = arith.divf %125, %117 : vector<2x1xf32>
    %127 = arith.subf %119, %121 : vector<2x1xf32>
    %128 = arith.addf %126, %127 : vector<2x1xf32>
    %129 = vector.shape_cast %128 : vector<2x1xf32> to vector<1x2x1xf32>
    %cst_64 = arith.constant dense<0.000000e+00> : vector<1xf32>
    %130 = vector.multi_reduction <add>, %129, %cst_64 [1, 2] : vector<1x2x1xf32> to vector<1xf32>
    %131 = vector.shape_cast %130 : vector<1xf32> to vector<1x1x1xf32>
    %132 = vector.extract %131[0, 0, 0] : f32 from vector<1x1x1xf32>
    %cst_65 = arith.constant 5.000000e-01 : f32
    %133 = arith.mulf %132, %cst_65 : f32
    %cst_66 = arith.constant 1.000000e-01 : f32
    %134 = arith.mulf %133, %cst_66 : f32
    %c2 = arith.constant 2 : index
    %135 = memref.load %arg16[%c2] : memref<3xf32, #tpu.memory_space<smem>>
    memref.store %134, %arg16[%c2] : memref<3xf32, #tpu.memory_space<smem>>
    return
  }
}

</mosaic_0001>

<llo_original>
// kernel: transxnet_srd_training_forward.1
$region0: #{transxnet_srd_training_forward.1}
  #allocation0 [shape = 'u32[]', space=smem, size = 0x4, offset = 0x4, fixed_abs, tag = 'smem constant byte address 0x4 - core index']
  #allocation1 [shape = 'u32[144,128]{1,0:T(1,128)}', space=vmem, size = 0x12000, scoped, tag = 'internal scratch']
  %s0 = inlined_call_operand.vmem [shape: f32[2,256], index: 0, kind: input, shape index: {}]
  %s1 = inlined_call_operand.vmem [shape: f32[2,256], index: 1, kind: input, shape index: {}]
  %s2 = inlined_call_operand.vmem [shape: f32[2,1024], index: 2, kind: input, shape index: {}]
  %s3 = inlined_call_operand.hbm [shape: f32[256,1024], index: 3, kind: input, shape index: {}]
  %s4 = inlined_call_operand.vmem [shape: f32[8,64], index: 4, kind: input, shape index: {}]
  %s5 = inlined_call_operand.vmem [shape: f32[8,256], index: 5, kind: input, shape index: {}]
  %s6 = inlined_call_operand.vmem [shape: f32[64,256], index: 6, kind: input, shape index: {}]
  %s7 = inlined_call_operand.vmem [shape: f32[16,16], index: 7, kind: input, shape index: {}]
  %s8 = inlined_call_operand.vmem [shape: f32[16,64], index: 8, kind: input, shape index: {}]
  %s9 = inlined_call_operand.vmem [shape: f32[16,64], index: 9, kind: input, shape index: {}]
  %s10 = inlined_call_operand.vmem [shape: f32[32,4], index: 10, kind: input, shape index: {}]
  %s11 = inlined_call_operand.vmem [shape: f32[32,16], index: 11, kind: input, shape index: {}]
  %s12 = inlined_call_operand.vmem [shape: f32[4,16], index: 12, kind: input, shape index: {}, may-alias: {12,15}]
  %s13 = inlined_call_operand.vmem [shape: f32[64,4], index: 13, kind: input, shape index: {}]
  %s14 = inlined_call_operand.vmem [shape: f32[64,16], index: 14, kind: input, shape index: {}]
  %s15 = inlined_call_operand.vmem [shape: f32[4,16], index: 15, kind: input, shape index: {}, may-alias: {12,15}]
  %s16 = inlined_call_operand.vmem [shape: f32[3], index: 16, kind: output, shape index: {}]
  %s17 = sld [smem:[#allocation0]]
  $region78: #{transxnet_srd_training_forward.1} parent=0
    _
  %s19 = ssub.s32 1, %s17
  %s20 = scalar_select 0, %s19, %s17
  $region1: #{transxnet_srd_training_forward.1} parent=0
    #allocation2 [shape = 'u8[1048576]{0}', space=vmem, size = 0x100000, scoped, tag = 'input window, operand 3, single buffered']
    #allocation3 [shape = 's32[1]{0}', space=sflag, size = 0x4, scoped, tag = 'scoped memory for transxnet_srd_training_forward.1']
    #allocation4 [shape = 's32[1]{0}', space=sflag, size = 0x4, scoped, tag = 'scoped memory for transxnet_srd_training_forward.1']
    #allocation5 [shape = 'u8[512]{0}', space=smem, size = 0x200, scoped, tag = 'output window, operand 0, single buffered']
    %21 = vsyncpa [#allocation3], 0
    %22 = vsyncpa [#allocation4], 0
    // Predicated region
    $region2: #{transxnet_srd_training_forward.1} parent=1 // pred_check
      _
    $region3: #{transxnet_srd_training_forward.1} parent=1 // pred_check_branch
      %24 = sbr.rel (0) target = $region5
    $region4: #{transxnet_srd_training_forward.1} parent=1 // pred_region
      _
    $region5: #{transxnet_srd_training_forward.1} parent=1 // pred_fallthru
      _
    // Predicated region
    $region6: #{transxnet_srd_training_forward.1} parent=1 // pred_check
      _
    $region7: #{transxnet_srd_training_forward.1} parent=1 // pred_check_branch
      %26 = sbr.rel (0) target = $region9
    $region8: #{transxnet_srd_training_forward.1} parent=1 // pred_region
      _
    $region9: #{transxnet_srd_training_forward.1} parent=1 // pred_fallthru
      _
    // Predicated region
    $region10: #{transxnet_srd_training_forward.1} parent=1 // pred_check
      _
    $region11: #{transxnet_srd_training_forward.1} parent=1 // pred_check_branch
      %28 = sbr.rel (0) target = $region13
    $region12: #{transxnet_srd_training_forward.1} parent=1 // pred_region
      _
    $region13: #{transxnet_srd_training_forward.1} parent=1 // pred_fallthru
      _
    // Predicated region
    $region14: #{transxnet_srd_training_forward.1} parent=1 // pred_check
      _
    $region15: #{transxnet_srd_training_forward.1} parent=1 // pred_check_branch
      %30 = sbr.rel (0) target = $region17
    $region16: #{transxnet_srd_training_forward.1} parent=1 // pred_region
      %s32 = ssub.s32 32768, 32768
      %33 = vsyncadd [#allocation3], %s32
      %s34 = sshll.u32 [#allocation2], 4
      %s35 = int_to_ptr.vmem [resolvable:$true] %s34
      %40 = dma.hbm_to_vmem [thread:$0]  %s3, 32768, %s35, [#allocation3], 1024, 1024, 64
    $region17: #{transxnet_srd_training_forward.1} parent=1 // pred_fallthru
      _
    // Predicated region
    $region18: #{transxnet_srd_training_forward.1} parent=1 // pred_check
      _
    $region19: #{transxnet_srd_training_forward.1} parent=1 // pred_check_branch
      %42 = sbr.rel (0) target = $region21
    $region20: #{transxnet_srd_training_forward.1} parent=1 // pred_region
      _
    $region21: #{transxnet_srd_training_forward.1} parent=1 // pred_fallthru
      _
    // Predicated region
    $region22: #{transxnet_srd_training_forward.1} parent=1 // pred_check
      _
    $region23: #{transxnet_srd_training_forward.1} parent=1 // pred_check_branch
      %44 = sbr.rel (0) target = $region25
    $region24: #{transxnet_srd_training_forward.1} parent=1 // pred_region
      _
    $region25: #{transxnet_srd_training_forward.1} parent=1 // pred_fallthru
      _
    // Predicated region
    $region26: #{transxnet_srd_training_forward.1} parent=1 // pred_check
      _
    $region27: #{transxnet_srd_training_forward.1} parent=1 // pred_check_branch
      %46 = sbr.rel (0) target = $region29
    $region28: #{transxnet_srd_training_forward.1} parent=1 // pred_region
      _
    $region29: #{transxnet_srd_training_forward.1} parent=1 // pred_fallthru
      _
    // Predicated region
    $region30: #{transxnet_srd_training_forward.1} parent=1 // pred_check
      _
    $region31: #{transxnet_srd_training_forward.1} parent=1 // pred_check_branch
      %48 = sbr.rel (0) target = $region33
    $region32: #{transxnet_srd_training_forward.1} parent=1 // pred_region
      _
    $region33: #{transxnet_srd_training_forward.1} parent=1 // pred_fallthru
      _
    // Predicated region
    $region34: #{transxnet_srd_training_forward.1} parent=1 // pred_check
      _
    $region35: #{transxnet_srd_training_forward.1} parent=1 // pred_check_branch
      %50 = sbr.rel (0) target = $region37
    $region36: #{transxnet_srd_training_forward.1} parent=1 // pred_region
      _
    $region37: #{transxnet_srd_training_forward.1} parent=1 // pred_fallthru
      _
    // Predicated region
    $region38: #{transxnet_srd_training_forward.1} parent=1 // pred_check
      _
    $region39: #{transxnet_srd_training_forward.1} parent=1 // pred_check_branch
      %52 = sbr.rel (0) target = $region41
    $region40: #{transxnet_srd_training_forward.1} parent=1 // pred_region
      _
    $region41: #{transxnet_srd_training_forward.1} parent=1 // pred_fallthru
      _
    // Predicated region
    $region42: #{transxnet_srd_training_forward.1} parent=1 // pred_check
      _
    $region43: #{transxnet_srd_training_forward.1} parent=1 // pred_check_branch
      %54 = sbr.rel (0) target = $region45
    $region44: #{transxnet_srd_training_forward.1} parent=1 // pred_region
      _
    $region45: #{transxnet_srd_training_forward.1} parent=1 // pred_fallthru
      _
    // Predicated region
    $region46: #{transxnet_srd_training_forward.1} parent=1 // pred_check
      _
    $region47: #{transxnet_srd_training_forward.1} parent=1 // pred_check_branch
      %56 = sbr.rel (0) target = $region49
    $region48: #{transxnet_srd_training_forward.1} parent=1 // pred_region
      _
    $region49: #{transxnet_srd_training_forward.1} parent=1 // pred_fallthru
      _
    // Predicated region
    $region50: #{transxnet_srd_training_forward.1} parent=1 // pred_check
      _
    $region51: #{transxnet_srd_training_forward.1} parent=1 // pred_check_branch
      %58 = sbr.rel (0) target = $region53
    $region52: #{transxnet_srd_training_forward.1} parent=1 // pred_region
      _
    $region53: #{transxnet_srd_training_forward.1} parent=1 // pred_fallthru
      _
    // Predicated region
    $region54: #{transxnet_srd_training_forward.1} parent=1 // pred_check
      _
    $region55: #{transxnet_srd_training_forward.1} parent=1 // pred_check_branch
      %60 = sbr.rel (0) target = $region57
    $region56: #{transxnet_srd_training_forward.1} parent=1 // pred_region
      _
    $region57: #{transxnet_srd_training_forward.1} parent=1 // pred_fallthru
      _
    // Predicated region
    $region58: #{transxnet_srd_training_forward.1} parent=1 // pred_check
      _
    $region59: #{transxnet_srd_training_forward.1} parent=1 // pred_check_branch
      %62 = sbr.rel (0) target = $region61
    $region60: #{transxnet_srd_training_forward.1} parent=1 // pred_region
      _
    $region61: #{transxnet_srd_training_forward.1} parent=1 // pred_fallthru
      _
    // Predicated region
    $region62: #{transxnet_srd_training_forward.1} parent=1 // pred_check
      _
    $region63: #{transxnet_srd_training_forward.1} parent=1 // pred_check_branch
      %64 = sbr.rel (0) target = $region65
    $region64: #{transxnet_srd_training_forward.1} parent=1 // pred_region
      _
    $region65: #{transxnet_srd_training_forward.1} parent=1 // pred_fallthru
      _
    // Predicated region
    $region66: #{transxnet_srd_training_forward.1} parent=1 // pred_check
      _
    $region67: #{transxnet_srd_training_forward.1} parent=1 // pred_check_branch
      %66 = sbr.rel (0) target = $region69
    $region68: #{transxnet_srd_training_forward.1} parent=1 // pred_region
      %67 = dma.done [#allocation3], 32768
    $region69: #{transxnet_srd_training_forward.1} parent=1 // pred_fallthru
      _
    %v68 = vld [vmem:[%s0] sm:$0xf]
    %v69 = vld [vmem:[%s1] sm:$0xf]
    %v70 = vand.u32 2147483647, %v68
    %v71 = vsub.f32 0.0, %v70
    %v72 = vmul.f32 %v71, 1.442695
    %v73 = vpow.pop %v72
    %v74 = vmax.f32 %v68, 0.0
    %v75 = vmul.f32 %v68, %v69
    %v76 = vsub.f32 %v74, %v75
    %v77 = vadd.f32 %v73, 1.0
    %v78 = vlog2.pop %v77
    %v79 = vmul.f32 %v78, 0.6931472
    %v80 = vadd.f32 %v76, %v79
    %vm81 = vcmp.ge.f32.partialorder %v68, 0.0
    %v82 = vsel %vm81, 1.0, %v73
    %v83 = vrcp.pop %v77
    %v84 = vmul.f32 %v82, %v83
    %v85 = vmul.f32 %v84, %v69
    %v88 = vunpack.c.l.s4 1983009808
    %v89 = vunpack.c.0.s8 %v88
    %v90 = vlaneseq
    %v91 = vshrl.u32 %v90, 7
    %v92 = vsub.s32 %v89, %v91
    %v93 = vrot.slane %v85, %v92
    %v94 = vcombine.high %v93, %v93
    %vm97 = vcmask 1041408
    %v98 = vsel %vm97, %v93, 0.0
    %v99 = vsel %vm97, %v94, 0.0
    %v100 = vadd.f32 %v98, %v99
    %101 = vadd.xlane.f32.xlu0 %v100
    %v102 = vpop.xlane.xlu0 %101
    %v103 = vadd.f32 %v84, %v69
    %v106 = vunpack.c.l.s4 1983009808
    %v107 = vunpack.c.0.s8 %v106
    %v108 = vlaneseq
    %v109 = vshrl.u32 %v108, 7
    %v110 = vsub.s32 %v107, %v109
    %v111 = vrot.slane %v103, %v110
    %v112 = vcombine.high %v111, %v111
    %v115 = vsel %vm97, %v111, 0.0
    %v116 = vsel %vm97, %v112, 0.0
    %v117 = vadd.f32 %v115, %v116
    %118 = vadd.xlane.f32.xlu0 %v117
    %v119 = vpop.xlane.xlu0 %118
    %v120 = vadd.f32 %v102, 1.0
    %v121 = vsub.f32 %v119, %v102
    %v122 = vadd.f32 %v121, 1.0
    %v123 = vrcp.pop %v122
    %v124 = vmul.f32 %v120, %v123
    %v125 = vsub.f32 1.0, %v124
    %v128 = vunpack.c.l.s4 1983009808
    %v129 = vunpack.c.0.s8 %v128
    %v130 = vlaneseq
    %v131 = vshrl.u32 %v130, 7
    %v132 = vsub.s32 %v129, %v131
    %v133 = vrot.slane %v80, %v132
    %v134 = vcombine.high %v133, %v133
    %v137 = vsel %vm97, %v133, 0.0
    %v138 = vsel %vm97, %v134, 0.0
    %v139 = vadd.f32 %v137, %v138
    %140 = vadd.xlane.f32.xlu0 %v139
    %v141 = vpop.xlane.xlu0 %140
    %v142 = vrot.slane %v141, 4
    %v143 = vadd.f32 %v141, %v142
    %v144 = vrot.slane %v143, 2
    %v145 = vadd.f32 %v143, %v144
    %v146 = vrot.slane %v145, 1
    %v147 = vadd.f32 %v145, %v146
    %s148 = vtos %v147
    %s149 = smul.f32 %s148, 0.001953125
    %vm150 = vcmask 1024
    %v151 = vsel %vm150, %v125, 0.0
    %152 = vadd.xlane.f32.xlu0 %v151
    %v153 = vpop.xlane.xlu0 %152
    %v154 = vrot.slane %v153, 4
    %v155 = vadd.f32 %v153, %v154
    %v156 = vrot.slane %v155, 2
    %v157 = vadd.f32 %v155, %v156
    %v158 = vrot.slane %v157, 1
    %v159 = vadd.f32 %v157, %v158
    %s160 = vtos %v159
    %s161 = smul.f32 %s160, 0.5
    %s162 = sadd.f32 %s149, %s161
    %s163 = scalar_lea.smem [#allocation5], 0
    %164 = sst [smem:[%s163]] %s162
    %v165 = vld [vmem:[%s4] sm:$0xff]
    %v166 = vld [vmem:[%s6] sm:$0xff]
    %v167 = vld [vmem:[%s6 + $0x8] sm:$0xff]
    %v168 = vld [vmem:[%s6 + $0x10] sm:$0xff]
    %v169 = vld [vmem:[%s6 + $0x18] sm:$0xff]
    %v170 = vld [vmem:[%s6 + $0x20] sm:$0xff]
    %v171 = vld [vmem:[%s6 + $0x28] sm:$0xff]
    %v172 = vld [vmem:[%s6 + $0x30] sm:$0xff]
    %v173 = vld [vmem:[%s6 + $0x38] sm:$0xff]
    %v174 = vld [vmem:[%s6 + $0x40] sm:$0xff]
    %v175 = vld [vmem:[%s6 + $0x48] sm:$0xff]
    %v176 = vld [vmem:[%s6 + $0x50] sm:$0xff]
    %v177 = vld [vmem:[%s6 + $0x58] sm:$0xff]
    %v178 = vld [vmem:[%s6 + $0x60] sm:$0xff]
    %v179 = vld [vmem:[%s6 + $0x68] sm:$0xff]
    %v180 = vld [vmem:[%s6 + $0x70] sm:$0xff]
    %v181 = vld [vmem:[%s6 + $0x78] sm:$0xff]
    %vm182 = vcmask 523264
    %v184 = vsel %vm182, %v165, 0
    %186 = vmatprep.subr.mxu0 %v167
    %187 = vmatpush1.msra.mxu0 %v166
    %188 = vmatprep.subr.mxu0 %v169
    %189 = vmatpush1.msra.mxu0 %v168
    %190 = vmatprep.subr.mxu0 %v171
    %191 = vmatpush1.msra.mxu0 %v170
    %192 = vmatprep.subr.mxu0 %v173
    %193 = vmatpush1.msra.mxu0 %v172
    %194 = vmatprep.subr.mxu0 %v175
    %195 = vmatpush1.msra.mxu0 %v174
    %196 = vmatprep.subr.mxu0 %v177
    %197 = vmatpush1.msra.mxu0 %v176
    %198 = vmatprep.subr.mxu0 %v179
    %199 = vmatpush1.msra.mxu0 %v178
    %200 = vmatprep.subr.mxu0 %v181
    %201 = vmatpush1.msra.mxu0 %v180
    %202 = vmatprep.subr.mxu0 0.0
    %203 = vmatpush1.msra.mxu0 0.0
    %204 = vmatprep.subr.mxu0 0.0
    %205 = vmatpush1.msra.mxu0 0.0
    %206 = vmatprep.subr.mxu0 0.0
    %207 = vmatpush1.msra.mxu0 0.0
    %208 = vmatprep.subr.mxu0 0.0
    %209 = vmatpush1.msra.mxu0 0.0
    %210 = vmatprep.subr.mxu0 0.0
    %211 = vmatpush1.msra.mxu0 0.0
    %212 = vmatprep.subr.mxu0 0.0
    %213 = vmatpush1.msra.mxu0 0.0
    %214 = vmatprep.subr.mxu0 0.0
    %215 = vmatpush1.msra.mxu0 0.0
    %216 = vmatprep.subr.mxu0 0.0
    %217 = vmatpush1.msra.mxu0 0.0
    %218 = vmatprep.subr.mxu0 0.0
    %219 = vmatpush1.msra.mxu0 0.0
    %220 = vmatprep.subr.mxu0 0.0
    %221 = vmatpush1.msra.mxu0 0.0
    %222 = vmatprep.subr.mxu0 0.0
    %223 = vmatpush1.msra.mxu0 0.0
    %224 = vmatprep.subr.mxu0 0.0
    %225 = vmatpush1.msra.mxu0 0.0
    %226 = vmatprep.subr.mxu0 0.0
    %227 = vmatpush1.msra.mxu0 0.0
    %228 = vmatprep.subr.mxu0 0.0
    %229 = vmatpush1.msra.mxu0 0.0
    %230 = vmatprep.subr.mxu0 0.0
    %231 = vmatpush1.msra.mxu0 0.0
    %232 = vmatprep.subr.mxu0 0.0
    %233 = vmatpush1.msra.mxu0 0.0
    %234 = vmatprep.subr.mxu0 0.0
    %235 = vmatpush1.msra.mxu0 0.0
    %236 = vmatprep.subr.mxu0 0.0
    %237 = vmatpush1.msra.mxu0 0.0
    %238 = vmatprep.subr.mxu0 0.0
    %239 = vmatpush1.msra.mxu0 0.0
    %240 = vmatprep.subr.mxu0 0.0
    %241 = vmatpush1.msra.mxu0 0.0
    %242 = vmatprep.subr.mxu0 0.0
    %243 = vmatpush1.msra.mxu0 0.0
    %244 = vmatprep.subr.mxu0 0.0
    %245 = vmatpush1.msra.mxu0 0.0
    %246 = vmatprep.subr.mxu0 0.0
    %247 = vmatpush1.msra.mxu0 0.0
    %248 = vmatprep.subr.mxu0 0.0
    %249 = vmatpush1.msra.mxu0 0.0
    %250 = vmatprep.mubr.f32.mxu0 0.0
    %251 = vmatmul.mubr.f32.gmra.mrb[0].mxu0 %v184
    %v252 = vpop.f32.mrb[0].mxu0
    %v253 = vadd.f32 0.0, %v252
    %v254 = vpop.f32.mrb[0].mxu0
    %v255 = vadd.f32 0.0, %v254
    %256 = vdwg.mxu0
    %v257 = vld [vmem:[%s5] sm:$0xff]
    %v258 = vld [vmem:[%s5 + $0x8] sm:$0xff]
    %v259 = vsub.f32 %v253, %v257
    %v260 = vsub.f32 %v255, %v258
    %v261 = vand.u32 2147483647, %v259
    %v262 = vand.u32 2147483647, %v260
    %v263 = vadd.f32 %v261, %v262
    %264 = vadd.xlane.f32.xlu0 %v263
    %v265 = vpop.xlane.xlu0 %264
    %v266 = vrot.slane %v265, 4
    %v267 = vadd.f32 %v265, %v266
    %v268 = vrot.slane %v267, 2
    %v269 = vadd.f32 %v267, %v268
    %v270 = vrot.slane %v269, 1
    %v271 = vadd.f32 %v269, %v270
    %s272 = vtos %v271
    %v273 = vstv %s272
    %v274 = vlog2.pop %v273
    %v275 = vmul.f32 %v274, 0.6931472
    %s276 = vtos %v275
    %s277 = sadd.f32 %s276, 0.0
    %v278 = vld [vmem:[%s7] sm:$0xff]
    %v279 = vld [vmem:[%s7 + $0x8] sm:$0xff]
    %v280 = vld [vmem:[%s9] sm:$0xff]
    %v281 = vld [vmem:[%s9 + $0x8] sm:$0xff]
    %vm282 = vcmask 130048
    %v284 = vsel %vm282, %v278, 0
    %v287 = vsel %vm282, %v279, 0
    %289 = vmatprep.subr.mxu0 0.0
    %290 = vmatpush1.msra.mxu0 %v280
    %291 = vmatprep.subr.mxu0 0.0
    %292 = vmatpush1.msra.mxu0 %v281
    %293 = vmatprep.subr.mxu0 0.0
    %294 = vmatpush1.msra.mxu0 0.0
    %295 = vmatprep.subr.mxu0 0.0
    %296 = vmatpush1.msra.mxu0 0.0
    %297 = vmatprep.subr.mxu0 0.0
    %298 = vmatpush1.msra.mxu0 0.0
    %299 = vmatprep.subr.mxu0 0.0
    %300 = vmatpush1.msra.mxu0 0.0
    %301 = vmatprep.subr.mxu0 0.0
    %302 = vmatpush1.msra.mxu0 0.0
    %303 = vmatprep.subr.mxu0 0.0
    %304 = vmatpush1.msra.mxu0 0.0
    %305 = vmatprep.subr.mxu0 0.0
    %306 = vmatpush1.msra.mxu0 0.0
    %307 = vmatprep.subr.mxu0 0.0
    %308 = vmatpush1.msra.mxu0 0.0
    %309 = vmatprep.subr.mxu0 0.0
    %310 = vmatpush1.msra.mxu0 0.0
    %311 = vmatprep.subr.mxu0 0.0
    %312 = vmatpush1.msra.mxu0 0.0
    %313 = vmatprep.subr.mxu0 0.0
    %314 = vmatpush1.msra.mxu0 0.0
    %315 = vmatprep.subr.mxu0 0.0
    %316 = vmatpush1.msra.mxu0 0.0
    %317 = vmatprep.subr.mxu0 0.0
    %318 = vmatpush1.msra.mxu0 0.0
    %319 = vmatprep.subr.mxu0 0.0
    %320 = vmatpush1.msra.mxu0 0.0
    %321 = vmatprep.subr.mxu0 0.0
    %322 = vmatpush1.msra.mxu0 0.0
    %323 = vmatprep.subr.mxu0 0.0
    %324 = vmatpush1.msra.mxu0 0.0
    %325 = vmatprep.subr.mxu0 0.0
    %326 = vmatpush1.msra.mxu0 0.0
    %327 = vmatprep.subr.mxu0 0.0
    %328 = vmatpush1.msra.mxu0 0.0
    %329 = vmatprep.subr.mxu0 0.0
    %330 = vmatpush1.msra.mxu0 0.0
    %331 = vmatprep.subr.mxu0 0.0
    %332 = vmatpush1.msra.mxu0 0.0
    %333 = vmatprep.subr.mxu0 0.0
    %334 = vmatpush1.msra.mxu0 0.0
    %335 = vmatprep.subr.mxu0 0.0
    %336 = vmatpush1.msra.mxu0 0.0
    %337 = vmatprep.subr.mxu0 0.0
    %338 = vmatpush1.msra.mxu0 0.0
    %339 = vmatprep.subr.mxu0 0.0
    %340 = vmatpush1.msra.mxu0 0.0
    %341 = vmatprep.subr.mxu0 0.0
    %342 = vmatpush1.msra.mxu0 0.0
    %343 = vmatprep.subr.mxu0 0.0
    %344 = vmatpush1.msra.mxu0 0.0
    %345 = vmatprep.subr.mxu0 0.0
    %346 = vmatpush1.msra.mxu0 0.0
    %347 = vmatprep.subr.mxu0 0.0
    %348 = vmatpush1.msra.mxu0 0.0
    %349 = vmatprep.subr.mxu0 0.0
    %350 = vmatpush1.msra.mxu0 0.0
    %351 = vmatprep.subr.mxu0 0.0
    %352 = vmatpush1.msra.mxu0 0.0
    %353 = vmatprep.mubr.f32.mxu0 0.0
    %354 = vmatmul.mubr.f32.gmra.mrb[0].mxu0 %v284
    %v355 = vpop.f32.mrb[0].mxu0
    %v356 = vadd.f32 0.0, %v355
    %v357 = vpop.f32.mrb[0].mxu0
    %358 = vmatprep.mubr.f32.mxu0 0.0
    %359 = vmatmul.mubr.f32.gmra.mrb[0].mxu0 %v287
    %v360 = vpop.f32.mrb[0].mxu0
    %v361 = vadd.f32 0.0, %v360
    %v362 = vpop.f32.mrb[0].mxu0
    %363 = vdwg.mxu0
    %v364 = vld [vmem:[%s8] sm:$0xff]
    %v365 = vld [vmem:[%s8 + $0x8] sm:$0xff]
    %v366 = vsub.f32 %v356, %v364
    %v367 = vsub.f32 %v361, %v365
    %v368 = vand.u32 2147483647, %v366
    %v369 = vand.u32 2147483647, %v367
    %v370 = vsel %vm182, %v368, 0.0
    %v371 = vsel %vm182, %v369, 0.0
    %v372 = vadd.f32 %v370, %v371
    %373 = vadd.xlane.f32.xlu0 %v372
    %v374 = vpop.xlane.xlu0 %373
    %v375 = vrot.slane %v374, 4
    %v376 = vadd.f32 %v374, %v375
    %v377 = vrot.slane %v376, 2
    %v378 = vadd.f32 %v376, %v377
    %v379 = vrot.slane %v378, 1
    %v380 = vadd.f32 %v378, %v379
    %s381 = vtos %v380
    %v382 = vstv %s381
    %v383 = vlog2.pop %v382
    %v384 = vmul.f32 %v383, 0.6931472
    %s385 = vtos %v384
    %s386 = sadd.f32 %s277, %s385
    %v387 = vld [vmem:[%s10] sm:$0xff]
    %v388 = vld [vmem:[%s10 + $0x8] sm:$0xff]
    %v389 = vld [vmem:[%s10 + $0x10] sm:$0xff]
    %v390 = vld [vmem:[%s10 + $0x18] sm:$0xff]
    %v391 = vld [vmem:[%s12] sm:$0xf]
    %vm392 = vcmask 31744
    %v394 = vsel %vm392, %v387, 0
    %v397 = vsel %vm392, %v388, 0
    %v400 = vsel %vm392, %v389, 0
    %v403 = vsel %vm392, %v390, 0
    %vm405 = vcmask 1043456
    %v407 = vsel %vm405, %v391, 0
    %409 = vmatprep.subr.mxu0 0.0
    %410 = vmatpush1.msra.mxu0 %v407
    %411 = vmatprep.subr.mxu0 0.0
    %412 = vmatpush1.msra.mxu0 0.0
    %413 = vmatprep.subr.mxu0 0.0
    %414 = vmatpush1.msra.mxu0 0.0
    %415 = vmatprep.subr.mxu0 0.0
    %416 = vmatpush1.msra.mxu0 0.0
    %417 = vmatprep.subr.mxu0 0.0
    %418 = vmatpush1.msra.mxu0 0.0
    %419 = vmatprep.subr.mxu0 0.0
    %420 = vmatpush1.msra.mxu0 0.0
    %421 = vmatprep.subr.mxu0 0.0
    %422 = vmatpush1.msra.mxu0 0.0
    %423 = vmatprep.subr.mxu0 0.0
    %424 = vmatpush1.msra.mxu0 0.0
    %425 = vmatprep.subr.mxu0 0.0
    %426 = vmatpush1.msra.mxu0 0.0
    %427 = vmatprep.subr.mxu0 0.0
    %428 = vmatpush1.msra.mxu0 0.0
    %429 = vmatprep.subr.mxu0 0.0
    %430 = vmatpush1.msra.mxu0 0.0
    %431 = vmatprep.subr.mxu0 0.0
    %432 = vmatpush1.msra.mxu0 0.0
    %433 = vmatprep.subr.mxu0 0.0
    %434 = vmatpush1.msra.mxu0 0.0
    %435 = vmatprep.subr.mxu0 0.0
    %436 = vmatpush1.msra.mxu0 0.0
    %437 = vmatprep.subr.mxu0 0.0
    %438 = vmatpush1.msra.mxu0 0.0
    %439 = vmatprep.subr.mxu0 0.0
    %440 = vmatpush1.msra.mxu0 0.0
    %441 = vmatprep.subr.mxu0 0.0
    %442 = vmatpush1.msra.mxu0 0.0
    %443 = vmatprep.subr.mxu0 0.0
    %444 = vmatpush1.msra.mxu0 0.0
    %445 = vmatprep.subr.mxu0 0.0
    %446 = vmatpush1.msra.mxu0 0.0
    %447 = vmatprep.subr.mxu0 0.0
    %448 = vmatpush1.msra.mxu0 0.0
    %449 = vmatprep.subr.mxu0 0.0
    %450 = vmatpush1.msra.mxu0 0.0
    %451 = vmatprep.subr.mxu0 0.0
    %452 = vmatpush1.msra.mxu0 0.0
    %453 = vmatprep.subr.mxu0 0.0
    %454 = vmatpush1.msra.mxu0 0.0
    %455 = vmatprep.subr.mxu0 0.0
    %456 = vmatpush1.msra.mxu0 0.0
    %457 = vmatprep.subr.mxu0 0.0
    %458 = vmatpush1.msra.mxu0 0.0
    %459 = vmatprep.subr.mxu0 0.0
    %460 = vmatpush1.msra.mxu0 0.0
    %461 = vmatprep.subr.mxu0 0.0
    %462 = vmatpush1.msra.mxu0 0.0
    %463 = vmatprep.subr.mxu0 0.0
    %464 = vmatpush1.msra.mxu0 0.0
    %465 = vmatprep.subr.mxu0 0.0
    %466 = vmatpush1.msra.mxu0 0.0
    %467 = vmatprep.subr.mxu0 0.0
    %468 = vmatpush1.msra.mxu0 0.0
    %469 = vmatprep.subr.mxu0 0.0
    %470 = vmatpush1.msra.mxu0 0.0
    %471 = vmatprep.subr.mxu0 0.0
    %472 = vmatpush1.msra.mxu0 0.0
    %473 = vmatprep.mubr.f32.mxu0 0.0
    %474 = vmatmul.mubr.f32.gmra.mrb[0].mxu0 %v394
    %v475 = vpop.f32.mrb[0].mxu0
    %v476 = vadd.f32 0.0, %v475
    %v477 = vpop.f32.mrb[0].mxu0
    %478 = vmatprep.mubr.f32.mxu0 0.0
    %479 = vmatmul.mubr.f32.gmra.mrb[0].mxu0 %v397
    %v480 = vpop.f32.mrb[0].mxu0
    %v481 = vadd.f32 0.0, %v480
    %v482 = vpop.f32.mrb[0].mxu0
    %483 = vmatprep.mubr.f32.mxu0 0.0
    %484 = vmatmul.mubr.f32.gmra.mrb[0].mxu0 %v400
    %v485 = vpop.f32.mrb[0].mxu0
    %v486 = vadd.f32 0.0, %v485
    %v487 = vpop.f32.mrb[0].mxu0
    %488 = vmatprep.mubr.f32.mxu0 0.0
    %489 = vmatmul.mubr.f32.gmra.mrb[0].mxu0 %v403
    %v490 = vpop.f32.mrb[0].mxu0
    %v491 = vadd.f32 0.0, %v490
    %v492 = vpop.f32.mrb[0].mxu0
    %493 = vdwg.mxu0
    %v494 = vld [vmem:[%s11] sm:$0xff]
    %v495 = vld [vmem:[%s11 + $0x8] sm:$0xff]
    %v496 = vld [vmem:[%s11 + $0x10] sm:$0xff]
    %v497 = vld [vmem:[%s11 + $0x18] sm:$0xff]
    %v498 = vsub.f32 %v476, %v494
    %v499 = vsub.f32 %v481, %v495
    %v500 = vsub.f32 %v486, %v496
    %v501 = vsub.f32 %v491, %v497
    %v502 = vand.u32 2147483647, %v498
    %v503 = vand.u32 2147483647, %v499
    %v504 = vand.u32 2147483647, %v500
    %v505 = vand.u32 2147483647, %v501
    %v506 = vsel %vm282, %v502, 0.0
    %v507 = vsel %vm282, %v503, 0.0
    %v508 = vadd.f32 %v506, %v507
    %v509 = vsel %vm282, %v504, 0.0
    %v510 = vadd.f32 %v508, %v509
    %v511 = vsel %vm282, %v505, 0.0
    %v512 = vadd.f32 %v510, %v511
    %513 = vadd.xlane.f32.xlu0 %v512
    %v514 = vpop.xlane.xlu0 %513
    %v515 = vrot.slane %v514, 4
    %v516 = vadd.f32 %v514, %v515
    %v517 = vrot.slane %v516, 2
    %v518 = vadd.f32 %v516, %v517
    %v519 = vrot.slane %v518, 1
    %v520 = vadd.f32 %v518, %v519
    %s521 = vtos %v520
    %v522 = vstv %s521
    %v523 = vlog2.pop %v522
    %v524 = vmul.f32 %v523, 0.6931472
    %s525 = vtos %v524
    %s526 = sadd.f32 %s386, %s525
    %v527 = vld [vmem:[%s13] sm:$0xff]
    %v528 = vld [vmem:[%s13 + $0x8] sm:$0xff]
    %v529 = vld [vmem:[%s13 + $0x10] sm:$0xff]
    %v530 = vld [vmem:[%s13 + $0x18] sm:$0xff]
    %v531 = vld [vmem:[%s13 + $0x20] sm:$0xff]
    %v532 = vld [vmem:[%s13 + $0x28] sm:$0xff]
    %v533 = vld [vmem:[%s13 + $0x30] sm:$0xff]
    %v534 = vld [vmem:[%s13 + $0x38] sm:$0xff]
    %v535 = vld [vmem:[%s15] sm:$0xf]
    %v537 = vsel %vm392, %v527, 0
    %v540 = vsel %vm392, %v528, 0
    %v543 = vsel %vm392, %v529, 0
    %v546 = vsel %vm392, %v530, 0
    %v549 = vsel %vm392, %v531, 0
    %v552 = vsel %vm392, %v532, 0
    %v555 = vsel %vm392, %v533, 0
    %v558 = vsel %vm392, %v534, 0
    %v561 = vsel %vm405, %v535, 0
    %563 = vmatprep.subr.mxu0 0.0
    %564 = vmatpush1.msra.mxu0 %v561
    %565 = vmatprep.subr.mxu0 0.0
    %566 = vmatpush1.msra.mxu0 0.0
    %567 = vmatprep.subr.mxu0 0.0
    %568 = vmatpush1.msra.mxu0 0.0
    %569 = vmatprep.subr.mxu0 0.0
    %570 = vmatpush1.msra.mxu0 0.0
    %571 = vmatprep.subr.mxu0 0.0
    %572 = vmatpush1.msra.mxu0 0.0
    %573 = vmatprep.subr.mxu0 0.0
    %574 = vmatpush1.msra.mxu0 0.0
    %575 = vmatprep.subr.mxu0 0.0
    %576 = vmatpush1.msra.mxu0 0.0
    %577 = vmatprep.subr.mxu0 0.0
    %578 = vmatpush1.msra.mxu0 0.0
    %579 = vmatprep.subr.mxu0 0.0
    %580 = vmatpush1.msra.mxu0 0.0
    %581 = vmatprep.subr.mxu0 0.0
    %582 = vmatpush1.msra.mxu0 0.0
    %583 = vmatprep.subr.mxu0 0.0
    %584 = vmatpush1.msra.mxu0 0.0
    %585 = vmatprep.subr.mxu0 0.0
    %586 = vmatpush1.msra.mxu0 0.0
    %587 = vmatprep.subr.mxu0 0.0
    %588 = vmatpush1.msra.mxu0 0.0
    %589 = vmatprep.subr.mxu0 0.0
    %590 = vmatpush1.msra.mxu0 0.0
    %591 = vmatprep.subr.mxu0 0.0
    %592 = vmatpush1.msra.mxu0 0.0
    %593 = vmatprep.subr.mxu0 0.0
    %594 = vmatpush1.msra.mxu0 0.0
    %595 = vmatprep.subr.mxu0 0.0
    %596 = vmatpush1.msra.mxu0 0.0
    %597 = vmatprep.subr.mxu0 0.0
    %598 = vmatpush1.msra.mxu0 0.0
    %599 = vmatprep.subr.mxu0 0.0
    %600 = vmatpush1.msra.mxu0 0.0
    %601 = vmatprep.subr.mxu0 0.0
    %602 = vmatpush1.msra.mxu0 0.0
    %603 = vmatprep.subr.mxu0 0.0
    %604 = vmatpush1.msra.mxu0 0.0
    %605 = vmatprep.subr.mxu0 0.0
    %606 = vmatpush1.msra.mxu0 0.0
    %607 = vmatprep.subr.mxu0 0.0
    %608 = vmatpush1.msra.mxu0 0.0
    %609 = vmatprep.subr.mxu0 0.0
    %610 = vmatpush1.msra.mxu0 0.0
    %611 = vmatprep.subr.mxu0 0.0
    %612 = vmatpush1.msra.mxu0 0.0
    %613 = vmatprep.subr.mxu0 0.0
    %614 = vmatpush1.msra.mxu0 0.0
    %615 = vmatprep.subr.mxu0 0.0
    %616 = vmatpush1.msra.mxu0 0.0
    %617 = vmatprep.subr.mxu0 0.0
    %618 = vmatpush1.msra.mxu0 0.0
    %619 = vmatprep.subr.mxu0 0.0
    %620 = vmatpush1.msra.mxu0 0.0
    %621 = vmatprep.subr.mxu0 0.0
    %622 = vmatpush1.msra.mxu0 0.0
    %623 = vmatprep.subr.mxu0 0.0
    %624 = vmatpush1.msra.mxu0 0.0
    %625 = vmatprep.subr.mxu0 0.0
    %626 = vmatpush1.msra.mxu0 0.0
    %627 = vmatprep.mubr.f32.mxu0 0.0
    %628 = vmatmul.mubr.f32.gmra.mrb[0].mxu0 %v537
    %v629 = vpop.f32.mrb[0].mxu0
    %v630 = vadd.f32 0.0, %v629
    %v631 = vpop.f32.mrb[0].mxu0
    %632 = vmatprep.mubr.f32.mxu0 0.0
    %633 = vmatmul.mubr.f32.gmra.mrb[0].mxu0 %v540
    %v634 = vpop.f32.mrb[0].mxu0
    %v635 = vadd.f32 0.0, %v634
    %v636 = vpop.f32.mrb[0].mxu0
    %637 = vmatprep.mubr.f32.mxu0 0.0
    %638 = vmatmul.mubr.f32.gmra.mrb[0].mxu0 %v543
    %v639 = vpop.f32.mrb[0].mxu0
    %v640 = vadd.f32 0.0, %v639
    %v641 = vpop.f32.mrb[0].mxu0
    %642 = vmatprep.mubr.f32.mxu0 0.0
    %643 = vmatmul.mubr.f32.gmra.mrb[0].mxu0 %v546
    %v644 = vpop.f32.mrb[0].mxu0
    %v645 = vadd.f32 0.0, %v644
    %v646 = vpop.f32.mrb[0].mxu0
    %647 = vmatprep.mubr.f32.mxu0 0.0
    %648 = vmatmul.mubr.f32.gmra.mrb[0].mxu0 %v549
    %v649 = vpop.f32.mrb[0].mxu0
    %v650 = vadd.f32 0.0, %v649
    %v651 = vpop.f32.mrb[0].mxu0
    %652 = vmatprep.mubr.f32.mxu0 0.0
    %653 = vmatmul.mubr.f32.gmra.mrb[0].mxu0 %v552
    %v654 = vpop.f32.mrb[0].mxu0
    %v655 = vadd.f32 0.0, %v654
    %v656 = vpop.f32.mrb[0].mxu0
    %657 = vmatprep.mubr.f32.mxu0 0.0
    %658 = vmatmul.mubr.f32.gmra.mrb[0].mxu0 %v555
    %v659 = vpop.f32.mrb[0].mxu0
    %v660 = vadd.f32 0.0, %v659
    %v661 = vpop.f32.mrb[0].mxu0
    %662 = vmatprep.mubr.f32.mxu0 0.0
    %663 = vmatmul.mubr.f32.gmra.mrb[0].mxu0 %v558
    %v664 = vpop.f32.mrb[0].mxu0
    %v665 = vadd.f32 0.0, %v664
    %v666 = vpop.f32.mrb[0].mxu0
    %667 = vdwg.mxu0
    %v668 = vld [vmem:[%s14] sm:$0xff]
    %v669 = vld [vmem:[%s14 + $0x8] sm:$0xff]
    %v670 = vld [vmem:[%s14 + $0x10] sm:$0xff]
    %v671 = vld [vmem:[%s14 + $0x18] sm:$0xff]
    %v672 = vld [vmem:[%s14 + $0x20] sm:$0xff]
    %v673 = vld [vmem:[%s14 + $0x28] sm:$0xff]
    %v674 = vld [vmem:[%s14 + $0x30] sm:$0xff]
    %v675 = vld [vmem:[%s14 + $0x38] sm:$0xff]
    %v676 = vsub.f32 %v630, %v668
    %v677 = vsub.f32 %v635, %v669
    %v678 = vsub.f32 %v640, %v670
    %v679 = vsub.f32 %v645, %v671
    %v680 = vsub.f32 %v650, %v672
    %v681 = vsub.f32 %v655, %v673
    %v682 = vsub.f32 %v660, %v674
    %v683 = vsub.f32 %v665, %v675
    %v684 = vand.u32 2147483647, %v676
    %v685 = vand.u32 2147483647, %v677
    %v686 = vand.u32 2147483647, %v678
    %v687 = vand.u32 2147483647, %v679
    %v688 = vand.u32 2147483647, %v680
    %v689 = vand.u32 2147483647, %v681
    %v690 = vand.u32 2147483647, %v682
    %v691 = vand.u32 2147483647, %v683
    %v692 = vsel %vm282, %v684, 0.0
    %v693 = vsel %vm282, %v685, 0.0
    %v694 = vadd.f32 %v692, %v693
    %v695 = vsel %vm282, %v686, 0.0
    %v696 = vadd.f32 %v694, %v695
    %v697 = vsel %vm282, %v687, 0.0
    %v698 = vadd.f32 %v696, %v697
    %v699 = vsel %vm282, %v688, 0.0
    %v700 = vadd.f32 %v698, %v699
    %v701 = vsel %vm282, %v689, 0.0
    %v702 = vadd.f32 %v700, %v701
    %v703 = vsel %vm282, %v690, 0.0
    %v704 = vadd.f32 %v702, %v703
    %v705 = vsel %vm282, %v691, 0.0
    %v706 = vadd.f32 %v704, %v705
    %707 = vadd.xlane.f32.xlu0 %v706
    %v708 = vpop.xlane.xlu0 %707
    %v709 = vrot.slane %v708, 4
    %v710 = vadd.f32 %v708, %v709
    %v711 = vrot.slane %v710, 2
    %v712 = vadd.f32 %v710, %v711
    %v713 = vrot.slane %v712, 1
    %v714 = vadd.f32 %v712, %v713
    %s715 = vtos %v714
    %v716 = vstv %s715
    %v717 = vlog2.pop %v716
    %v718 = vmul.f32 %v717, 0.6931472
    %s719 = vtos %v718
    %s720 = sadd.f32 %s526, %s719
    %s721 = smul.f32 %s720, 0.005
    %s722 = scalar_lea.smem [#allocation5], 1
    %723 = sst [smem:[%s722]] %s721
    %v724 = vld [vmem:[#allocation2] sm:$0xff]
    %v725 = vld [vmem:[#allocation2 + $0x8] sm:$0xff]
    %v726 = vld [vmem:[#allocation2 + $0x10] sm:$0xff]
    %v727 = vld [vmem:[#allocation2 + $0x18] sm:$0xff]
    %v728 = vld [vmem:[#allocation2 + $0x20] sm:$0xff]
    %v729 = vld [vmem:[#allocation2 + $0x28] sm:$0xff]
    %v730 = vld [vmem:[#allocation2 + $0x30] sm:$0xff]
    %v731 = vld [vmem:[#allocation2 + $0x38] sm:$0xff]
    %v732 = vld [vmem:[#allocation2 + $0x40] sm:$0xff]
    %v733 = vld [vmem:[#allocation2 + $0x48] sm:$0xff]
    %v734 = vld [vmem:[#allocation2 + $0x50] sm:$0xff]
    %v735 = vld [vmem:[#allocation2 + $0x58] sm:$0xff]
    %v736 = vld [vmem:[#allocation2 + $0x60] sm:$0xff]
    %v737 = vld [vmem:[#allocation2 + $0x68] sm:$0xff]
    %v738 = vld [vmem:[#allocation2 + $0x70] sm:$0xff]
    %v739 = vld [vmem:[#allocation2 + $0x78] sm:$0xff]
    %v740 = vld [vmem:[#allocation2 + $0x80] sm:$0xff]
    %v741 = vld [vmem:[#allocation2 + $0x88] sm:$0xff]
    %v742 = vld [vmem:[#allocation2 + $0x90] sm:$0xff]
    %v743 = vld [vmem:[#allocation2 + $0x98] sm:$0xff]
    %v744 = vld [vmem:[#allocation2 + $0xa0] sm:$0xff]
    %v745 = vld [vmem:[#allocation2 + $0xa8] sm:$0xff]
    %v746 = vld [vmem:[#allocation2 + $0xb0] sm:$0xff]
    %v747 = vld [vmem:[#allocation2 + $0xb8] sm:$0xff]
    %v748 = vld [vmem:[#allocation2 + $0xc0] sm:$0xff]
    %v749 = vld [vmem:[#allocation2 + $0xc8] sm:$0xff]
    %v750 = vld [vmem:[#allocation2 + $0xd0] sm:$0xff]
    %v751 = vld [vmem:[#allocation2 + $0xd8] sm:$0xff]
    %v752 = vld [vmem:[#allocation2 + $0xe0] sm:$0xff]
    %v753 = vld [vmem:[#allocation2 + $0xe8] sm:$0xff]
    %v754 = vld [vmem:[#allocation2 + $0xf0] sm:$0xff]
    %v755 = vld [vmem:[#allocation2 + $0xf8] sm:$0xff]
    %v756 = vld [vmem:[#allocation2 + $0x100] sm:$0xff]
    %v757 = vld [vmem:[#allocation2 + $0x108] sm:$0xff]
    %v758 = vld [vmem:[#allocation2 + $0x110] sm:$0xff]
    %v759 = vld [vmem:[#allocation2 + $0x118] sm:$0xff]
    %v760 = vld [vmem:[#allocation2 + $0x120] sm:$0xff]
    %v761 = vld [vmem:[#allocation2 + $0x128] sm:$0xff]
    %v762 = vld [vmem:[#allocation2 + $0x130] sm:$0xff]
    %v763 = vld [vmem:[#allocation2 + $0x138] sm:$0xff]
    %v764 = vld [vmem:[#allocation2 + $0x140] sm:$0xff]
    %v765 = vld [vmem:[#allocation2 + $0x148] sm:$0xff]
    %v766 = vld [vmem:[#allocation2 + $0x150] sm:$0xff]
    %v767 = vld [vmem:[#allocation2 + $0x158] sm:$0xff]
    %v768 = vld [vmem:[#allocation2 + $0x160] sm:$0xff]
    %v769 = vld [vmem:[#allocation2 + $0x168] sm:$0xff]
    %v770 = vld [vmem:[#allocation2 + $0x170] sm:$0xff]
    %v771 = vld [vmem:[#allocation2 + $0x178] sm:$0xff]
    %v772 = vld [vmem:[#allocation2 + $0x180] sm:$0xff]
    %v773 = vld [vmem:[#allocation2 + $0x188] sm:$0xff]
    %v774 = vld [vmem:[#allocation2 + $0x190] sm:$0xff]
    %v775 = vld [vmem:[#allocation2 + $0x198] sm:$0xff]
    %v776 = vld [vmem:[#allocation2 + $0x1a0] sm:$0xff]
    %v777 = vld [vmem:[#allocation2 + $0x1a8] sm:$0xff]
    %v778 = vld [vmem:[#allocation2 + $0x1b0] sm:$0xff]
    %v779 = vld [vmem:[#allocation2 + $0x1b8] sm:$0xff]
    %v780 = vld [vmem:[#allocation2 + $0x1c0] sm:$0xff]
    %v781 = vld [vmem:[#allocation2 + $0x1c8] sm:$0xff]
    %v782 = vld [vmem:[#allocation2 + $0x1d0] sm:$0xff]
    %v783 = vld [vmem:[#allocation2 + $0x1d8] sm:$0xff]
    %v784 = vld [vmem:[#allocation2 + $0x1e0] sm:$0xff]
    %v785 = vld [vmem:[#allocation2 + $0x1e8] sm:$0xff]
    %v786 = vld [vmem:[#allocation2 + $0x1f0] sm:$0xff]
    %v787 = vld [vmem:[#allocation2 + $0x1f8] sm:$0xff]
    %v788 = vld [vmem:[#allocation2 + $0x200] sm:$0xff]
    %v789 = vld [vmem:[#allocation2 + $0x208] sm:$0xff]
    %v790 = vld [vmem:[#allocation2 + $0x210] sm:$0xff]
    %v791 = vld [vmem:[#allocation2 + $0x218] sm:$0xff]
    %v792 = vld [vmem:[#allocation2 + $0x220] sm:$0xff]
    %v793 = vld [vmem:[#allocation2 + $0x228] sm:$0xff]
    %v794 = vld [vmem:[#allocation2 + $0x230] sm:$0xff]
    %v795 = vld [vmem:[#allocation2 + $0x238] sm:$0xff]
    %v796 = vld [vmem:[#allocation2 + $0x240] sm:$0xff]
    %v797 = vld [vmem:[#allocation2 + $0x248] sm:$0xff]
    %v798 = vld [vmem:[#allocation2 + $0x250] sm:$0xff]
    %v799 = vld [vmem:[#allocation2 + $0x258] sm:$0xff]
    %v800 = vld [vmem:[#allocation2 + $0x260] sm:$0xff]
    %v801 = vld [vmem:[#allocation2 + $0x268] sm:$0xff]
    %v802 = vld [vmem:[#allocation2 + $0x270] sm:$0xff]
    %v803 = vld [vmem:[#allocation2 + $0x278] sm:$0xff]
    %v804 = vld [vmem:[#allocation2 + $0x280] sm:$0xff]
    %v805 = vld [vmem:[#allocation2 + $0x288] sm:$0xff]
    %v806 = vld [vmem:[#allocation2 + $0x290] sm:$0xff]
    %v807 = vld [vmem:[#allocation2 + $0x298] sm:$0xff]
    %v808 = vld [vmem:[#allocation2 + $0x2a0] sm:$0xff]
    %v809 = vld [vmem:[#allocation2 + $0x2a8] sm:$0xff]
    %v810 = vld [vmem:[#allocation2 + $0x2b0] sm:$0xff]
    %v811 = vld [vmem:[#allocation2 + $0x2b8] sm:$0xff]
    %v812 = vld [vmem:[#allocation2 + $0x2c0] sm:$0xff]
    %v813 = vld [vmem:[#allocation2 + $0x2c8] sm:$0xff]
    %v814 = vld [vmem:[#allocation2 + $0x2d0] sm:$0xff]
    %v815 = vld [vmem:[#allocation2 + $0x2d8] sm:$0xff]
    %v816 = vld [vmem:[#allocation2 + $0x2e0] sm:$0xff]
    %v817 = vld [vmem:[#allocation2 + $0x2e8] sm:$0xff]
    %v818 = vld [vmem:[#allocation2 + $0x2f0] sm:$0xff]
    %v819 = vld [vmem:[#allocation2 + $0x2f8] sm:$0xff]
    %v820 = vld [vmem:[#allocation2 + $0x300] sm:$0xff]
    %v821 = vld [vmem:[#allocation2 + $0x308] sm:$0xff]
    %v822 = vld [vmem:[#allocation2 + $0x310] sm:$0xff]
    %v823 = vld [vmem:[#allocation2 + $0x318] sm:$0xff]
    %v824 = vld [vmem:[#allocation2 + $0x320] sm:$0xff]
    %v825 = vld [vmem:[#allocation2 + $0x328] sm:$0xff]
    %v826 = vld [vmem:[#allocation2 + $0x330] sm:$0xff]
    %v827 = vld [vmem:[#allocation2 + $0x338] sm:$0xff]
    %v828 = vld [vmem:[#allocation2 + $0x340] sm:$0xff]
    %v829 = vld [vmem:[#allocation2 + $0x348] sm:$0xff]
    %v830 = vld [vmem:[#allocation2 + $0x350] sm:$0xff]
    %v831 = vld [vmem:[#allocation2 + $0x358] sm:$0xff]
    %v832 = vld [vmem:[#allocation2 + $0x360] sm:$0xff]
    %v833 = vld [vmem:[#allocation2 + $0x368] sm:$0xff]
    %v834 = vld [vmem:[#allocation2 + $0x370] sm:$0xff]
    %v835 = vld [vmem:[#allocation2 + $0x378] sm:$0xff]
    %v836 = vld [vmem:[#allocation2 + $0x380] sm:$0xff]
    %v837 = vld [vmem:[#allocation2 + $0x388] sm:$0xff]
    %v838 = vld [vmem:[#allocation2 + $0x390] sm:$0xff]
    %v839 = vld [vmem:[#allocation2 + $0x398] sm:$0xff]
    %v840 = vld [vmem:[#allocation2 + $0x3a0] sm:$0xff]
    %v841 = vld [vmem:[#allocation2 + $0x3a8] sm:$0xff]
    %v842 = vld [vmem:[#allocation2 + $0x3b0] sm:$0xff]
    %v843 = vld [vmem:[#allocation2 + $0x3b8] sm:$0xff]
    %v844 = vld [vmem:[#allocation2 + $0x3c0] sm:$0xff]
    %v845 = vld [vmem:[#allocation2 + $0x3c8] sm:$0xff]
    %v846 = vld [vmem:[#allocation2 + $0x3d0] sm:$0xff]
    %v847 = vld [vmem:[#allocation2 + $0x3d8] sm:$0xff]
    %v848 = vld [vmem:[#allocation2 + $0x3e0] sm:$0xff]
    %v849 = vld [vmem:[#allocation2 + $0x3e8] sm:$0xff]
    %v850 = vld [vmem:[#allocation2 + $0x3f0] sm:$0xff]
    %v851 = vld [vmem:[#allocation2 + $0x3f8] sm:$0xff]
    %v852 = vld [vmem:[#allocation2 + $0x400] sm:$0xff]
    %v853 = vld [vmem:[#allocation2 + $0x408] sm:$0xff]
    %v854 = vld [vmem:[#allocation2 + $0x410] sm:$0xff]
    %v855 = vld [vmem:[#allocation2 + $0x418] sm:$0xff]
    %v856 = vld [vmem:[#allocation2 + $0x420] sm:$0xff]
    %v857 = vld [vmem:[#allocation2 + $0x428] sm:$0xff]
    %v858 = vld [vmem:[#allocation2 + $0x430] sm:$0xff]
    %v859 = vld [vmem:[#allocation2 + $0x438] sm:$0xff]
    %v860 = vld [vmem:[#allocation2 + $0x440] sm:$0xff]
    %v861 = vld [vmem:[#allocation2 + $0x448] sm:$0xff]
    %v862 = vld [vmem:[#allocation2 + $0x450] sm:$0xff]
    %v863 = vld [vmem:[#allocation2 + $0x458] sm:$0xff]
    %v864 = vld [vmem:[#allocation2 + $0x460] sm:$0xff]
    %v865 = vld [vmem:[#allocation2 + $0x468] sm:$0xff]
    %v866 = vld [vmem:[#allocation2 + $0x470] sm:$0xff]
    %v867 = vld [vmem:[#allocation2 + $0x478] sm:$0xff]
    %v868 = vld [vmem:[#allocation2 + $0x480] sm:$0xff]
    %v869 = vld [vmem:[#allocation2 + $0x488] sm:$0xff]
    %v870 = vld [vmem:[#allocation2 + $0x490] sm:$0xff]
    %v871 = vld [vmem:[#allocation2 + $0x498] sm:$0xff]
    %v872 = vld [vmem:[#allocation2 + $0x4a0] sm:$0xff]
    %v873 = vld [vmem:[#allocation2 + $0x4a8] sm:$0xff]
    %v874 = vld [vmem:[#allocation2 + $0x4b0] sm:$0xff]
    %v875 = vld [vmem:[#allocation2 + $0x4b8] sm:$0xff]
    %v876 = vld [vmem:[#allocation2 + $0x4c0] sm:$0xff]
    %v877 = vld [vmem:[#allocation2 + $0x4c8] sm:$0xff]
    %v878 = vld [vmem:[#allocation2 + $0x4d0] sm:$0xff]
    %v879 = vld [vmem:[#allocation2 + $0x4d8] sm:$0xff]
    %v880 = vld [vmem:[#allocation2 + $0x4e0] sm:$0xff]
    %v881 = vld [vmem:[#allocation2 + $0x4e8] sm:$0xff]
    %v882 = vld [vmem:[#allocation2 + $0x4f0] sm:$0xff]
    %v883 = vld [vmem:[#allocation2 + $0x4f8] sm:$0xff]
    %v884 = vld [vmem:[#allocation2 + $0x500] sm:$0xff]
    %v885 = vld [vmem:[#allocation2 + $0x508] sm:$0xff]
    %v886 = vld [vmem:[#allocation2 + $0x510] sm:$0xff]
    %v887 = vld [vmem:[#allocation2 + $0x518] sm:$0xff]
    %v888 = vld [vmem:[#allocation2 + $0x520] sm:$0xff]
    %v889 = vld [vmem:[#allocation2 + $0x528] sm:$0xff]
    %v890 = vld [vmem:[#allocation2 + $0x530] sm:$0xff]
    %v891 = vld [vmem:[#allocation2 + $0x538] sm:$0xff]
    %v892 = vld [vmem:[#allocation2 + $0x540] sm:$0xff]
    %v893 = vld [vmem:[#allocation2 + $0x548] sm:$0xff]
    %v894 = vld [vmem:[#allocation2 + $0x550] sm:$0xff]
    %v895 = vld [vmem:[#allocation2 + $0x558] sm:$0xff]
    %v896 = vld [vmem:[#allocation2 + $0x560] sm:$0xff]
    %v897 = vld [vmem:[#allocation2 + $0x568] sm:$0xff]
    %v898 = vld [vmem:[#allocation2 + $0x570] sm:$0xff]
    %v899 = vld [vmem:[#allocation2 + $0x578] sm:$0xff]
    %v900 = vld [vmem:[#allocation2 + $0x580] sm:$0xff]
    %v901 = vld [vmem:[#allocation2 + $0x588] sm:$0xff]
    %v902 = vld [vmem:[#allocation2 + $0x590] sm:$0xff]
    %v903 = vld [vmem:[#allocation2 + $0x598] sm:$0xff]
    %v904 = vld [vmem:[#allocation2 + $0x5a0] sm:$0xff]
    %v905 = vld [vmem:[#allocation2 + $0x5a8] sm:$0xff]
    %v906 = vld [vmem:[#allocation2 + $0x5b0] sm:$0xff]
    %v907 = vld [vmem:[#allocation2 + $0x5b8] sm:$0xff]
    %v908 = vld [vmem:[#allocation2 + $0x5c0] sm:$0xff]
    %v909 = vld [vmem:[#allocation2 + $0x5c8] sm:$0xff]
    %v910 = vld [vmem:[#allocation2 + $0x5d0] sm:$0xff]
    %v911 = vld [vmem:[#allocation2 + $0x5d8] sm:$0xff]
    %v912 = vld [vmem:[#allocation2 + $0x5e0] sm:$0xff]
    %v913 = vld [vmem:[#allocation2 + $0x5e8] sm:$0xff]
    %v914 = vld [vmem:[#allocation2 + $0x5f0] sm:$0xff]
    %v915 = vld [vmem:[#allocation2 + $0x5f8] sm:$0xff]
    %v916 = vld [vmem:[#allocation2 + $0x600] sm:$0xff]
    %v917 = vld [vmem:[#allocation2 + $0x608] sm:$0xff]
    %v918 = vld [vmem:[#allocation2 + $0x610] sm:$0xff]
    %v919 = vld [vmem:[#allocation2 + $0x618] sm:$0xff]
    %v920 = vld [vmem:[#allocation2 + $0x620] sm:$0xff]
    %v921 = vld [vmem:[#allocation2 + $0x628] sm:$0xff]
    %v922 = vld [vmem:[#allocation2 + $0x630] sm:$0xff]
    %v923 = vld [vmem:[#allocation2 + $0x638] sm:$0xff]
    %v924 = vld [vmem:[#allocation2 + $0x640] sm:$0xff]
    %v925 = vld [vmem:[#allocation2 + $0x648] sm:$0xff]
    %v926 = vld [vmem:[#allocation2 + $0x650] sm:$0xff]
    %v927 = vld [vmem:[#allocation2 + $0x658] sm:$0xff]
    %v928 = vld [vmem:[#allocation2 + $0x660] sm:$0xff]
    %v929 = vld [vmem:[#allocation2 + $0x668] sm:$0xff]
    %v930 = vld [vmem:[#allocation2 + $0x670] sm:$0xff]
    %v931 = vld [vmem:[#allocation2 + $0x678] sm:$0xff]
    %v932 = vld [vmem:[#allocation2 + $0x680] sm:$0xff]
    %v933 = vld [vmem:[#allocation2 + $0x688] sm:$0xff]
    %v934 = vld [vmem:[#allocation2 + $0x690] sm:$0xff]
    %v935 = vld [vmem:[#allocation2 + $0x698] sm:$0xff]
    %v936 = vld [vmem:[#allocation2 + $0x6a0] sm:$0xff]
    %v937 = vld [vmem:[#allocation2 + $0x6a8] sm:$0xff]
    %v938 = vld [vmem:[#allocation2 + $0x6b0] sm:$0xff]
    %v939 = vld [vmem:[#allocation2 + $0x6b8] sm:$0xff]
    %v940 = vld [vmem:[#allocation2 + $0x6c0] sm:$0xff]
    %v941 = vld [vmem:[#allocation2 + $0x6c8] sm:$0xff]
    %v942 = vld [vmem:[#allocation2 + $0x6d0] sm:$0xff]
    %v943 = vld [vmem:[#allocation2 + $0x6d8] sm:$0xff]
    %v944 = vld [vmem:[#allocation2 + $0x6e0] sm:$0xff]
    %v945 = vld [vmem:[#allocation2 + $0x6e8] sm:$0xff]
    %v946 = vld [vmem:[#allocation2 + $0x6f0] sm:$0xff]
    %v947 = vld [vmem:[#allocation2 + $0x6f8] sm:$0xff]
    %v948 = vld [vmem:[#allocation2 + $0x700] sm:$0xff]
    %v949 = vld [vmem:[#allocation2 + $0x708] sm:$0xff]
    %v950 = vld [vmem:[#allocation2 + $0x710] sm:$0xff]
    %v951 = vld [vmem:[#allocation2 + $0x718] sm:$0xff]
    %v952 = vld [vmem:[#allocation2 + $0x720] sm:$0xff]
    %v953 = vld [vmem:[#allocation2 + $0x728] sm:$0xff]
    %v954 = vld [vmem:[#allocation2 + $0x730] sm:$0xff]
    %v955 = vld [vmem:[#allocation2 + $0x738] sm:$0xff]
    %v956 = vld [vmem:[#allocation2 + $0x740] sm:$0xff]
    %v957 = vld [vmem:[#allocation2 + $0x748] sm:$0xff]
    %v958 = vld [vmem:[#allocation2 + $0x750] sm:$0xff]
    %v959 = vld [vmem:[#allocation2 + $0x758] sm:$0xff]
    %v960 = vld [vmem:[#allocation2 + $0x760] sm:$0xff]
    %v961 = vld [vmem:[#allocation2 + $0x768] sm:$0xff]
    %v962 = vld [vmem:[#allocation2 + $0x770] sm:$0xff]
    %v963 = vld [vmem:[#allocation2 + $0x778] sm:$0xff]
    %v964 = vld [vmem:[#allocation2 + $0x780] sm:$0xff]
    %v965 = vld [vmem:[#allocation2 + $0x788] sm:$0xff]
    %v966 = vld [vmem:[#allocation2 + $0x790] sm:$0xff]
    %v967 = vld [vmem:[#allocation2 + $0x798] sm:$0xff]
    %v968 = vld [vmem:[#allocation2 + $0x7a0] sm:$0xff]
    %v969 = vld [vmem:[#allocation2 + $0x7a8] sm:$0xff]
    %v970 = vld [vmem:[#allocation2 + $0x7b0] sm:$0xff]
    %v971 = vld [vmem:[#allocation2 + $0x7b8] sm:$0xff]
    %v972 = vld [vmem:[#allocation2 + $0x7c0] sm:$0xff]
    %v973 = vld [vmem:[#allocation2 + $0x7c8] sm:$0xff]
    %v974 = vld [vmem:[#allocation2 + $0x7d0] sm:$0xff]
    %v975 = vld [vmem:[#allocation2 + $0x7d8] sm:$0xff]
    %v976 = vld [vmem:[#allocation2 + $0x7e0] sm:$0xff]
    %v977 = vld [vmem:[#allocation2 + $0x7e8] sm:$0xff]
    %v978 = vld [vmem:[#allocation2 + $0x7f0] sm:$0xff]
    %v979 = vld [vmem:[#allocation2 + $0x7f8] sm:$0xff]
    %v982 = vunpack.c.l.s4 1983009808
    %v983 = vunpack.c.0.s8 %v982
    %v984 = vlaneseq
    %v985 = vshrl.u32 %v984, 7
    %v986 = vsub.s32 %v983, %v985
    %v987 = vrot.slane %v68, %v986
    %v988 = vcombine.high %v987, %v987
    %991 = vmatprep.subr.mxu0 %v725
    %992 = vmatpush1.msra.mxu0 %v724
    %993 = vmatprep.subr.mxu0 %v733
    %994 = vmatpush1.msra.mxu0 %v732
    %995 = vmatprep.subr.mxu0 %v741
    %996 = vmatpush1.msra.mxu0 %v740
    %997 = vmatprep.subr.mxu0 %v749
    %998 = vmatpush1.msra.mxu0 %v748
    %999 = vmatprep.subr.mxu0 %v757
    %1000 = vmatpush1.msra.mxu0 %v756
    %1001 = vmatprep.subr.mxu0 %v765
    %1002 = vmatpush1.msra.mxu0 %v764
    %1003 = vmatprep.subr.mxu0 %v773
    %1004 = vmatpush1.msra.mxu0 %v772
    %1005 = vmatprep.subr.mxu0 %v781
    %1006 = vmatpush1.msra.mxu0 %v780
    %1007 = vmatprep.subr.mxu0 %v789
    %1008 = vmatpush1.msra.mxu0 %v788
    %1009 = vmatprep.subr.mxu0 %v797
    %1010 = vmatpush1.msra.mxu0 %v796
    %1011 = vmatprep.subr.mxu0 %v805
    %1012 = vmatpush1.msra.mxu0 %v804
    %1013 = vmatprep.subr.mxu0 %v813
    %1014 = vmatpush1.msra.mxu0 %v812
    %1015 = vmatprep.subr.mxu0 %v821
    %1016 = vmatpush1.msra.mxu0 %v820
    %1017 = vmatprep.subr.mxu0 %v829
    %1018 = vmatpush1.msra.mxu0 %v828
    %1019 = vmatprep.subr.mxu0 %v837
    %1020 = vmatpush1.msra.mxu0 %v836
    %1021 = vmatprep.subr.mxu0 %v845
    %1022 = vmatpush1.msra.mxu0 %v844
    %1023 = vmatprep.subr.mxu0 %v853
    %1024 = vmatpush1.msra.mxu0 %v852
    %1025 = vmatprep.subr.mxu0 %v861
    %1026 = vmatpush1.msra.mxu0 %v860
    %1027 = vmatprep.subr.mxu0 %v869
    %1028 = vmatpush1.msra.mxu0 %v868
    %1029 = vmatprep.subr.mxu0 %v877
    %1030 = vmatpush1.msra.mxu0 %v876
    %1031 = vmatprep.subr.mxu0 %v885
    %1032 = vmatpush1.msra.mxu0 %v884
    %1033 = vmatprep.subr.mxu0 %v893
    %1034 = vmatpush1.msra.mxu0 %v892
    %1035 = vmatprep.subr.mxu0 %v901
    %1036 = vmatpush1.msra.mxu0 %v900
    %1037 = vmatprep.subr.mxu0 %v909
    %1038 = vmatpush1.msra.mxu0 %v908
    %1039 = vmatprep.subr.mxu0 %v917
    %1040 = vmatpush1.msra.mxu0 %v916
    %1041 = vmatprep.subr.mxu0 %v925
    %1042 = vmatpush1.msra.mxu0 %v924
    %1043 = vmatprep.subr.mxu0 %v933
    %1044 = vmatpush1.msra.mxu0 %v932
    %1045 = vmatprep.subr.mxu0 %v941
    %1046 = vmatpush1.msra.mxu0 %v940
    %1047 = vmatprep.subr.mxu0 %v949
    %1048 = vmatpush1.msra.mxu0 %v948
    %1049 = vmatprep.subr.mxu0 %v957
    %1050 = vmatpush1.msra.mxu0 %v956
    %1051 = vmatprep.subr.mxu0 %v965
    %1052 = vmatpush1.msra.mxu0 %v964
    %1053 = vmatprep.subr.mxu0 %v973
    %1054 = vmatpush1.msra.mxu0 %v972
    %1055 = vmatprep.mubr.f32.mxu0 %v988
    %1056 = vmatmul.mubr.f32.gmra.mrb[0].mxu0 %v987
    %v1057 = vpop.f32.mrb[0].mxu0
    %v1058 = vadd.f32 0.0, %v1057
    %v1059 = vpop.f32.mrb[0].mxu0
    %v1060 = vadd.f32 0.0, %v1059
    %1061 = vdwg.mxu0
    %1062 = vmatprep.subr.mxu0 %v727
    %1063 = vmatpush1.msra.mxu0 %v726
    %1064 = vmatprep.subr.mxu0 %v735
    %1065 = vmatpush1.msra.mxu0 %v734
    %1066 = vmatprep.subr.mxu0 %v743
    %1067 = vmatpush1.msra.mxu0 %v742
    %1068 = vmatprep.subr.mxu0 %v751
    %1069 = vmatpush1.msra.mxu0 %v750
    %1070 = vmatprep.subr.mxu0 %v759
    %1071 = vmatpush1.msra.mxu0 %v758
    %1072 = vmatprep.subr.mxu0 %v767
    %1073 = vmatpush1.msra.mxu0 %v766
    %1074 = vmatprep.subr.mxu0 %v775
    %1075 = vmatpush1.msra.mxu0 %v774
    %1076 = vmatprep.subr.mxu0 %v783
    %1077 = vmatpush1.msra.mxu0 %v782
    %1078 = vmatprep.subr.mxu0 %v791
    %1079 = vmatpush1.msra.mxu0 %v790
    %1080 = vmatprep.subr.mxu0 %v799
    %1081 = vmatpush1.msra.mxu0 %v798
    %1082 = vmatprep.subr.mxu0 %v807
    %1083 = vmatpush1.msra.mxu0 %v806
    %1084 = vmatprep.subr.mxu0 %v815
    %1085 = vmatpush1.msra.mxu0 %v814
    %1086 = vmatprep.subr.mxu0 %v823
    %1087 = vmatpush1.msra.mxu0 %v822
    %1088 = vmatprep.subr.mxu0 %v831
    %1089 = vmatpush1.msra.mxu0 %v830
    %1090 = vmatprep.subr.mxu0 %v839
    %1091 = vmatpush1.msra.mxu0 %v838
    %1092 = vmatprep.subr.mxu0 %v847
    %1093 = vmatpush1.msra.mxu0 %v846
    %1094 = vmatprep.subr.mxu0 %v855
    %1095 = vmatpush1.msra.mxu0 %v854
    %1096 = vmatprep.subr.mxu0 %v863
    %1097 = vmatpush1.msra.mxu0 %v862
    %1098 = vmatprep.subr.mxu0 %v871
    %1099 = vmatpush1.msra.mxu0 %v870
    %1100 = vmatprep.subr.mxu0 %v879
    %1101 = vmatpush1.msra.mxu0 %v878
    %1102 = vmatprep.subr.mxu0 %v887
    %1103 = vmatpush1.msra.mxu0 %v886
    %1104 = vmatprep.subr.mxu0 %v895
    %1105 = vmatpush1.msra.mxu0 %v894
    %1106 = vmatprep.subr.mxu0 %v903
    %1107 = vmatpush1.msra.mxu0 %v902
    %1108 = vmatprep.subr.mxu0 %v911
    %1109 = vmatpush1.msra.mxu0 %v910
    %1110 = vmatprep.subr.mxu0 %v919
    %1111 = vmatpush1.msra.mxu0 %v918
    %1112 = vmatprep.subr.mxu0 %v927
    %1113 = vmatpush1.msra.mxu0 %v926
    %1114 = vmatprep.subr.mxu0 %v935
    %1115 = vmatpush1.msra.mxu0 %v934
    %1116 = vmatprep.subr.mxu0 %v943
    %1117 = vmatpush1.msra.mxu0 %v942
    %1118 = vmatprep.subr.mxu0 %v951
    %1119 = vmatpush1.msra.mxu0 %v950
    %1120 = vmatprep.subr.mxu0 %v959
    %1121 = vmatpush1.msra.mxu0 %v958
    %1122 = vmatprep.subr.mxu0 %v967
    %1123 = vmatpush1.msra.mxu0 %v966
    %1124 = vmatprep.subr.mxu0 %v975
    %1125 = vmatpush1.msra.mxu0 %v974
    %1126 = vmatprep.mubr.f32.mxu0 %v988
    %1127 = vmatmul.mubr.f32.gmra.mrb[0].mxu0 %v987
    %v1128 = vpop.f32.mrb[0].mxu0
    %v1129 = vadd.f32 0.0, %v1128
    %v1130 = vpop.f32.mrb[0].mxu0
    %v1131 = vadd.f32 0.0, %v1130
    %1132 = vdwg.mxu0
    %1133 = vmatprep.subr.mxu0 %v729
    %1134 = vmatpush1.msra.mxu0 %v728
    %1135 = vmatprep.subr.mxu0 %v737
    %1136 = vmatpush1.msra.mxu0 %v736
    %1137 = vmatprep.subr.mxu0 %v745
    %1138 = vmatpush1.msra.mxu0 %v744
    %1139 = vmatprep.subr.mxu0 %v753
    %1140 = vmatpush1.msra.mxu0 %v752
    %1141 = vmatprep.subr.mxu0 %v761
    %1142 = vmatpush1.msra.mxu0 %v760
    %1143 = vmatprep.subr.mxu0 %v769
    %1144 = vmatpush1.msra.mxu0 %v768
    %1145 = vmatprep.subr.mxu0 %v777
    %1146 = vmatpush1.msra.mxu0 %v776
    %1147 = vmatprep.subr.mxu0 %v785
    %1148 = vmatpush1.msra.mxu0 %v784
    %1149 = vmatprep.subr.mxu0 %v793
    %1150 = vmatpush1.msra.mxu0 %v792
    %1151 = vmatprep.subr.mxu0 %v801
    %1152 = vmatpush1.msra.mxu0 %v800
    %1153 = vmatprep.subr.mxu0 %v809
    %1154 = vmatpush1.msra.mxu0 %v808
    %1155 = vmatprep.subr.mxu0 %v817
    %1156 = vmatpush1.msra.mxu0 %v816
    %1157 = vmatprep.subr.mxu0 %v825
    %1158 = vmatpush1.msra.mxu0 %v824
    %1159 = vmatprep.subr.mxu0 %v833
    %1160 = vmatpush1.msra.mxu0 %v832
    %1161 = vmatprep.subr.mxu0 %v841
    %1162 = vmatpush1.msra.mxu0 %v840
    %1163 = vmatprep.subr.mxu0 %v849
    %1164 = vmatpush1.msra.mxu0 %v848
    %1165 = vmatprep.subr.mxu0 %v857
    %1166 = vmatpush1.msra.mxu0 %v856
    %1167 = vmatprep.subr.mxu0 %v865
    %1168 = vmatpush1.msra.mxu0 %v864
    %1169 = vmatprep.subr.mxu0 %v873
    %1170 = vmatpush1.msra.mxu0 %v872
    %1171 = vmatprep.subr.mxu0 %v881
    %1172 = vmatpush1.msra.mxu0 %v880
    %1173 = vmatprep.subr.mxu0 %v889
    %1174 = vmatpush1.msra.mxu0 %v888
    %1175 = vmatprep.subr.mxu0 %v897
    %1176 = vmatpush1.msra.mxu0 %v896
    %1177 = vmatprep.subr.mxu0 %v905
    %1178 = vmatpush1.msra.mxu0 %v904
    %1179 = vmatprep.subr.mxu0 %v913
    %1180 = vmatpush1.msra.mxu0 %v912
    %1181 = vmatprep.subr.mxu0 %v921
    %1182 = vmatpush1.msra.mxu0 %v920
    %1183 = vmatprep.subr.mxu0 %v929
    %1184 = vmatpush1.msra.mxu0 %v928
    %1185 = vmatprep.subr.mxu0 %v937
    %1186 = vmatpush1.msra.mxu0 %v936
    %1187 = vmatprep.subr.mxu0 %v945
    %1188 = vmatpush1.msra.mxu0 %v944
    %1189 = vmatprep.subr.mxu0 %v953
    %1190 = vmatpush1.msra.mxu0 %v952
    %1191 = vmatprep.subr.mxu0 %v961
    %1192 = vmatpush1.msra.mxu0 %v960
    %1193 = vmatprep.subr.mxu0 %v969
    %1194 = vmatpush1.msra.mxu0 %v968
    %1195 = vmatprep.subr.mxu0 %v977
    %1196 = vmatpush1.msra.mxu0 %v976
    %1197 = vmatprep.mubr.f32.mxu0 %v988
    %1198 = vmatmul.mubr.f32.gmra.mrb[0].mxu0 %v987
    %v1199 = vpop.f32.mrb[0].mxu0
    %v1200 = vadd.f32 0.0, %v1199
    %v1201 = vpop.f32.mrb[0].mxu0
    %v1202 = vadd.f32 0.0, %v1201
    %1203 = vdwg.mxu0
    %1204 = vmatprep.subr.mxu0 %v731
    %1205 = vmatpush1.msra.mxu0 %v730
    %1206 = vmatprep.subr.mxu0 %v739
    %1207 = vmatpush1.msra.mxu0 %v738
    %1208 = vmatprep.subr.mxu0 %v747
    %1209 = vmatpush1.msra.mxu0 %v746
    %1210 = vmatprep.subr.mxu0 %v755
    %1211 = vmatpush1.msra.mxu0 %v754
    %1212 = vmatprep.subr.mxu0 %v763
    %1213 = vmatpush1.msra.mxu0 %v762
    %1214 = vmatprep.subr.mxu0 %v771
    %1215 = vmatpush1.msra.mxu0 %v770
    %1216 = vmatprep.subr.mxu0 %v779
    %1217 = vmatpush1.msra.mxu0 %v778
    %1218 = vmatprep.subr.mxu0 %v787
    %1219 = vmatpush1.msra.mxu0 %v786
    %1220 = vmatprep.subr.mxu0 %v795
    %1221 = vmatpush1.msra.mxu0 %v794
    %1222 = vmatprep.subr.mxu0 %v803
    %1223 = vmatpush1.msra.mxu0 %v802
    %1224 = vmatprep.subr.mxu0 %v811
    %1225 = vmatpush1.msra.mxu0 %v810
    %1226 = vmatprep.subr.mxu0 %v819
    %1227 = vmatpush1.msra.mxu0 %v818
    %1228 = vmatprep.subr.mxu0 %v827
    %1229 = vmatpush1.msra.mxu0 %v826
    %1230 = vmatprep.subr.mxu0 %v835
    %1231 = vmatpush1.msra.mxu0 %v834
    %1232 = vmatprep.subr.mxu0 %v843
    %1233 = vmatpush1.msra.mxu0 %v842
    %1234 = vmatprep.subr.mxu0 %v851
    %1235 = vmatpush1.msra.mxu0 %v850
    %1236 = vmatprep.subr.mxu0 %v859
    %1237 = vmatpush1.msra.mxu0 %v858
    %1238 = vmatprep.subr.mxu0 %v867
    %1239 = vmatpush1.msra.mxu0 %v866
    %1240 = vmatprep.subr.mxu0 %v875
    %1241 = vmatpush1.msra.mxu0 %v874
    %1242 = vmatprep.subr.mxu0 %v883
    %1243 = vmatpush1.msra.mxu0 %v882
    %1244 = vmatprep.subr.mxu0 %v891
    %1245 = vmatpush1.msra.mxu0 %v890
    %1246 = vmatprep.subr.mxu0 %v899
    %1247 = vmatpush1.msra.mxu0 %v898
    %1248 = vmatprep.subr.mxu0 %v907
    %1249 = vmatpush1.msra.mxu0 %v906
    %1250 = vmatprep.subr.mxu0 %v915
    %1251 = vmatpush1.msra.mxu0 %v914
    %1252 = vmatprep.subr.mxu0 %v923
    %1253 = vmatpush1.msra.mxu0 %v922
    %1254 = vmatprep.subr.mxu0 %v931
    %1255 = vmatpush1.msra.mxu0 %v930
    %1256 = vmatprep.subr.mxu0 %v939
    %1257 = vmatpush1.msra.mxu0 %v938
    %1258 = vmatprep.subr.mxu0 %v947
    %1259 = vmatpush1.msra.mxu0 %v946
    %1260 = vmatprep.subr.mxu0 %v955
    %1261 = vmatpush1.msra.mxu0 %v954
    %1262 = vmatprep.subr.mxu0 %v963
    %1263 = vmatpush1.msra.mxu0 %v962
    %1264 = vmatprep.subr.mxu0 %v971
    %1265 = vmatpush1.msra.mxu0 %v970
    %1266 = vmatprep.subr.mxu0 %v979
    %1267 = vmatpush1.msra.mxu0 %v978
    %1268 = vmatprep.mubr.f32.mxu0 %v988
    %1269 = vmatmul.mubr.f32.gmra.mrb[0].mxu0 %v987
    %v1270 = vpop.f32.mrb[0].mxu0
    %v1271 = vadd.f32 0.0, %v1270
    %v1272 = vpop.f32.mrb[0].mxu0
    %v1273 = vadd.f32 0.0, %v1272
    %1274 = vdwg.mxu0
    %v1275 = vmul.f32 %v1058, 0.5
    %v1276 = vmul.f32 %v1060, 0.5
    %v1277 = vmul.f32 %v1129, 0.5
    %v1278 = vmul.f32 %v1131, 0.5
    %v1279 = vmul.f32 %v1200, 0.5
    %v1280 = vmul.f32 %v1202, 0.5
    %v1281 = vmul.f32 %v1271, 0.5
    %v1282 = vmul.f32 %v1273, 0.5
    %v1283 = vld [vmem:[%s2] sm:$0xff]
    %v1284 = vld [vmem:[%s2 + $0x8] sm:$0xff]
    %v1285 = vmul.f32 %v1283, 0.5
    %v1286 = vmul.f32 %v1284, 0.5
    %v1287 = vsel %vm97, %v1275, -inf
    %v1288 = vsel %vm97, %v1276, -inf
    %v1289 = vsel %vm97, %v1277, -inf
    %v1290 = vsel %vm97, %v1278, -inf
    %v1291 = vsel %vm97, %v1279, -inf
    %v1292 = vmax.f32 %v1287, %v1291
    %v1293 = vsel %vm97, %v1280, -inf
    %v1294 = vmax.f32 %v1288, %v1293
    %v1295 = vsel %vm97, %v1281, -inf
    %v1296 = vmax.f32 %v1289, %v1295
    %v1297 = vsel %vm97, %v1282, -inf
    %v1298 = vmax.f32 %v1290, %v1297
    %v1299 = vmax.f32 %v1292, %v1294
    %v1300 = vmax.f32 %v1296, %v1298
    %v1301 = vmax.f32 %v1299, %v1300
    %1302 = vmax.xlane.f32.xlu0 %v1301
    %v1303 = vpop.xlane.xlu0 %1302
    %v1306 = vcombine.high %v1285, %v1285
    %v1308 = vunpack.c.l.s4 1983009808
    %v1309 = vunpack.c.0.s8 %v1308
    %v1310 = vlaneseq
    %v1311 = vshrl.u32 %v1310, 7
    %v1312 = vsub.s32 %v1309, %v1311
    %v1313 = vrot.slane %v1285, %v1312
    %v1315 = vunpack.c.l.s4 1983009808
    %v1316 = vunpack.c.0.s8 %v1315
    %v1317 = vlaneseq
    %v1318 = vshrl.u32 %v1317, 7
    %v1319 = vsub.s32 %v1316, %v1318
    %v1320 = vrot.slane %v1306, %v1319
    %v1321 = vcombine.high %v1313, %v1313
    %v1322 = vcombine.high %v1320, %v1320
    %v1323 = vcombine.high %v1286, %v1286
    %v1325 = vunpack.c.l.s4 1983009808
    %v1326 = vunpack.c.0.s8 %v1325
    %v1327 = vlaneseq
    %v1328 = vshrl.u32 %v1327, 7
    %v1329 = vsub.s32 %v1326, %v1328
    %v1330 = vrot.slane %v1286, %v1329
    %v1332 = vunpack.c.l.s4 1983009808
    %v1333 = vunpack.c.0.s8 %v1332
    %v1334 = vlaneseq
    %v1335 = vshrl.u32 %v1334, 7
    %v1336 = vsub.s32 %v1333, %v1335
    %v1337 = vrot.slane %v1323, %v1336
    %v1338 = vcombine.high %v1330, %v1330
    %v1339 = vcombine.high %v1337, %v1337
    %v1348 = vsel %vm97, %v1313, -inf
    %v1349 = vsel %vm97, %v1321, -inf
    %v1350 = vsel %vm97, %v1320, -inf
    %v1351 = vsel %vm97, %v1322, -inf
    %v1352 = vsel %vm97, %v1330, -inf
    %v1353 = vmax.f32 %v1348, %v1352
    %v1354 = vsel %vm97, %v1338, -inf
    %v1355 = vmax.f32 %v1349, %v1354
    %v1356 = vsel %vm97, %v1337, -inf
    %v1357 = vmax.f32 %v1350, %v1356
    %v1358 = vsel %vm97, %v1339, -inf
    %v1359 = vmax.f32 %v1351, %v1358
    %v1360 = vmax.f32 %v1353, %v1355
    %v1361 = vmax.f32 %v1357, %v1359
    %v1362 = vmax.f32 %v1360, %v1361
    %1363 = vmax.xlane.f32.xlu0 %v1362
    %v1364 = vpop.xlane.xlu0 %1363
    %v1365 = vsub.f32 %v1275, %v1303
    %v1366 = vsub.f32 %v1276, %v1303
    %v1367 = vsub.f32 %v1277, %v1303
    %v1368 = vsub.f32 %v1278, %v1303
    %v1369 = vsub.f32 %v1279, %v1303
    %v1370 = vsub.f32 %v1280, %v1303
    %v1371 = vsub.f32 %v1281, %v1303
    %v1372 = vsub.f32 %v1282, %v1303
    %v1373 = vmul.f32 %v1365, 1.442695
    %v1374 = vpow.pop %v1373
    %v1375 = vmul.f32 %v1366, 1.442695
    %v1376 = vpow.pop %v1375
    %v1377 = vmul.f32 %v1367, 1.442695
    %v1378 = vpow.pop %v1377
    %v1379 = vmul.f32 %v1368, 1.442695
    %v1380 = vpow.pop %v1379
    %v1381 = vmul.f32 %v1369, 1.442695
    %v1382 = vpow.pop %v1381
    %v1383 = vmul.f32 %v1370, 1.442695
    %v1384 = vpow.pop %v1383
    %v1385 = vmul.f32 %v1371, 1.442695
    %v1386 = vpow.pop %v1385
    %v1387 = vmul.f32 %v1372, 1.442695
    %v1388 = vpow.pop %v1387
    %v1391 = vunpack.c.l.s4 269488144
    %v1392 = vunpack.c.0.s8 %v1391
    %v1393 = vlaneseq
    %v1394 = vshrl.u32 %v1393, 7
    %v1395 = vsub.s32 %v1392, %v1394
    %v1396 = vrot.slane %v1364, %v1395
    %v1398 = vsub.f32 %v1285, %v1396
    %v1399 = vsub.f32 %v1286, %v1396
    %v1400 = vmul.f32 %v1398, 1.442695
    %v1401 = vpow.pop %v1400
    %v1402 = vmul.f32 %v1399, 1.442695
    %v1403 = vpow.pop %v1402
    %v1404 = vsel %vm97, %v1374, 0.0
    %v1405 = vsel %vm97, %v1376, 0.0
    %v1406 = vadd.f32 %v1404, %v1405
    %v1407 = vsel %vm97, %v1378, 0.0
    %v1408 = vadd.f32 %v1406, %v1407
    %v1409 = vsel %vm97, %v1380, 0.0
    %v1410 = vadd.f32 %v1408, %v1409
    %v1411 = vsel %vm97, %v1382, 0.0
    %v1412 = vadd.f32 %v1410, %v1411
    %v1413 = vsel %vm97, %v1384, 0.0
    %v1414 = vadd.f32 %v1412, %v1413
    %v1415 = vsel %vm97, %v1386, 0.0
    %v1416 = vadd.f32 %v1414, %v1415
    %v1417 = vsel %vm97, %v1388, 0.0
    %v1418 = vadd.f32 %v1416, %v1417
    %1419 = vadd.xlane.f32.xlu0 %v1418
    %v1420 = vpop.xlane.xlu0 %1419
    %v1423 = vcombine.high %v1401, %v1401
    %v1425 = vunpack.c.l.s4 1983009808
    %v1426 = vunpack.c.0.s8 %v1425
    %v1427 = vlaneseq
    %v1428 = vshrl.u32 %v1427, 7
    %v1429 = vsub.s32 %v1426, %v1428
    %v1430 = vrot.slane %v1401, %v1429
    %v1432 = vunpack.c.l.s4 1983009808
    %v1433 = vunpack.c.0.s8 %v1432
    %v1434 = vlaneseq
    %v1435 = vshrl.u32 %v1434, 7
    %v1436 = vsub.s32 %v1433, %v1435
    %v1437 = vrot.slane %v1423, %v1436
    %v1438 = vcombine.high %v1430, %v1430
    %v1439 = vcombine.high %v1437, %v1437
    %v1440 = vcombine.high %v1403, %v1403
    %v1442 = vunpack.c.l.s4 1983009808
    %v1443 = vunpack.c.0.s8 %v1442
    %v1444 = vlaneseq
    %v1445 = vshrl.u32 %v1444, 7
    %v1446 = vsub.s32 %v1443, %v1445
    %v1447 = vrot.slane %v1403, %v1446
    %v1449 = vunpack.c.l.s4 1983009808
    %v1450 = vunpack.c.0.s8 %v1449
    %v1451 = vlaneseq
    %v1452 = vshrl.u32 %v1451, 7
    %v1453 = vsub.s32 %v1450, %v1452
    %v1454 = vrot.slane %v1440, %v1453
    %v1455 = vcombine.high %v1447, %v1447
    %v1456 = vcombine.high %v1454, %v1454
    %v1465 = vsel %vm97, %v1430, 0.0
    %v1466 = vsel %vm97, %v1438, 0.0
    %v1467 = vadd.f32 %v1465, %v1466
    %v1468 = vsel %vm97, %v1437, 0.0
    %v1469 = vadd.f32 %v1467, %v1468
    %v1470 = vsel %vm97, %v1439, 0.0
    %v1471 = vadd.f32 %v1469, %v1470
    %v1472 = vsel %vm97, %v1447, 0.0
    %v1473 = vadd.f32 %v1471, %v1472
    %v1474 = vsel %vm97, %v1455, 0.0
    %v1475 = vadd.f32 %v1473, %v1474
    %v1476 = vsel %vm97, %v1454, 0.0
    %v1477 = vadd.f32 %v1475, %v1476
    %v1478 = vsel %vm97, %v1456, 0.0
    %v1479 = vadd.f32 %v1477, %v1478
    %1480 = vadd.xlane.f32.xlu0 %v1479
    %v1481 = vpop.xlane.xlu0 %1480
    %v1482 = vlog2.pop %v1420
    %v1483 = vmul.f32 %v1482, 0.6931472
    %v1484 = vadd.f32 %v1303, %v1483
    %v1485 = vlog2.pop %v1481
    %v1486 = vmul.f32 %v1485, 0.6931472
    %v1487 = vadd.f32 %v1364, %v1486
    %v1496 = vcombine.low %v1275, %v1276
    %v1497 = vcombine.low %v1277, %v1278
    %v1499 = vunpack.c.l.s4 1983009808
    %v1500 = vunpack.c.0.s8 %v1499
    %v1501 = vlaneseq
    %v1502 = vshrl.u32 %v1501, 7
    %v1503 = vsub.s32 %v1500, %v1502
    %v1504 = vrot.slane %v1496, %v1503
    %v1506 = vunpack.c.l.s4 1983009808
    %v1507 = vunpack.c.0.s8 %v1506
    %v1508 = vlaneseq
    %v1509 = vshrl.u32 %v1508, 7
    %v1510 = vsub.s32 %v1507, %v1509
    %v1511 = vrot.slane %v1497, %v1510
    %v1512 = vcombine.low %v1504, %v1511
    %v1513 = vcombine.low %v1279, %v1280
    %v1514 = vcombine.low %v1281, %v1282
    %v1516 = vunpack.c.l.s4 1983009808
    %v1517 = vunpack.c.0.s8 %v1516
    %v1518 = vlaneseq
    %v1519 = vshrl.u32 %v1518, 7
    %v1520 = vsub.s32 %v1517, %v1519
    %v1521 = vrot.slane %v1513, %v1520
    %v1523 = vunpack.c.l.s4 1983009808
    %v1524 = vunpack.c.0.s8 %v1523
    %v1525 = vlaneseq
    %v1526 = vshrl.u32 %v1525, 7
    %v1527 = vsub.s32 %v1524, %v1526
    %v1528 = vrot.slane %v1514, %v1527
    %v1529 = vcombine.low %v1521, %v1528
    %v1532 = vsub.f32 %v1285, %v1512
    %v1533 = vsub.f32 %v1286, %v1529
    %v1534 = vmul.f32 %v1401, %v1532
    %v1535 = vmul.f32 %v1403, %v1533
    %v1538 = vcombine.high %v1534, %v1534
    %v1540 = vunpack.c.l.s4 1983009808
    %v1541 = vunpack.c.0.s8 %v1540
    %v1542 = vlaneseq
    %v1543 = vshrl.u32 %v1542, 7
    %v1544 = vsub.s32 %v1541, %v1543
    %v1545 = vrot.slane %v1534, %v1544
    %v1547 = vunpack.c.l.s4 1983009808
    %v1548 = vunpack.c.0.s8 %v1547
    %v1549 = vlaneseq
    %v1550 = vshrl.u32 %v1549, 7
    %v1551 = vsub.s32 %v1548, %v1550
    %v1552 = vrot.slane %v1538, %v1551
    %v1553 = vcombine.high %v1545, %v1545
    %v1554 = vcombine.high %v1552, %v1552
    %v1555 = vcombine.high %v1535, %v1535
    %v1557 = vunpack.c.l.s4 1983009808
    %v1558 = vunpack.c.0.s8 %v1557
    %v1559 = vlaneseq
    %v1560 = vshrl.u32 %v1559, 7
    %v1561 = vsub.s32 %v1558, %v1560
    %v1562 = vrot.slane %v1535, %v1561
    %v1564 = vunpack.c.l.s4 1983009808
    %v1565 = vunpack.c.0.s8 %v1564
    %v1566 = vlaneseq
    %v1567 = vshrl.u32 %v1566, 7
    %v1568 = vsub.s32 %v1565, %v1567
    %v1569 = vrot.slane %v1555, %v1568
    %v1570 = vcombine.high %v1562, %v1562
    %v1571 = vcombine.high %v1569, %v1569
    %v1580 = vsel %vm97, %v1545, 0.0
    %v1581 = vsel %vm97, %v1553, 0.0
    %v1582 = vadd.f32 %v1580, %v1581
    %v1583 = vsel %vm97, %v1552, 0.0
    %v1584 = vadd.f32 %v1582, %v1583
    %v1585 = vsel %vm97, %v1554, 0.0
    %v1586 = vadd.f32 %v1584, %v1585
    %v1587 = vsel %vm97, %v1562, 0.0
    %v1588 = vadd.f32 %v1586, %v1587
    %v1589 = vsel %vm97, %v1570, 0.0
    %v1590 = vadd.f32 %v1588, %v1589
    %v1591 = vsel %vm97, %v1569, 0.0
    %v1592 = vadd.f32 %v1590, %v1591
    %v1593 = vsel %vm97, %v1571, 0.0
    %v1594 = vadd.f32 %v1592, %v1593
    %1595 = vadd.xlane.f32.xlu0 %v1594
    %v1596 = vpop.xlane.xlu0 %1595
    %v1597 = vrcp.pop %v1481
    %v1598 = vmul.f32 %v1596, %v1597
    %v1599 = vsub.f32 %v1484, %v1487
    %v1600 = vadd.f32 %v1598, %v1599
    %v1601 = vsel %vm150, %v1600, 0.0
    %1602 = vadd.xlane.f32.xlu0 %v1601
    %v1603 = vpop.xlane.xlu0 %1602
    %v1604 = vrot.slane %v1603, 4
    %v1605 = vadd.f32 %v1603, %v1604
    %v1606 = vrot.slane %v1605, 2
    %v1607 = vadd.f32 %v1605, %v1606
    %v1608 = vrot.slane %v1607, 1
    %v1609 = vadd.f32 %v1607, %v1608
    %s1610 = vtos %v1609
    %s1611 = smul.f32 %s1610, 0.5
    %s1612 = smul.f32 %s1611, 0.1
    %s1613 = scalar_lea.smem [#allocation5], 2
    %1614 = sst [smem:[%s1613]] %s1612
    // Predicated region
    $region70: #{transxnet_srd_training_forward.1} parent=1 // pred_check
      _
    $region71: #{transxnet_srd_training_forward.1} parent=1 // pred_check_branch
      %1616 = sbr.rel (0) target = $region73
    $region72: #{transxnet_srd_training_forward.1} parent=1 // pred_region
      %s1618 = ssub.s32 16, 16
      %1619 = vsyncadd [#allocation4], %s1618
      %s1621 = sshll.u32 %s16, 4
      %s1622 = int_to_ptr.vmem [resolvable:$true] %s1621
      %1624 = dma.smem_to_vmem [#allocation5], 16, %s1622, [#allocation4]
    $region73: #{transxnet_srd_training_forward.1} parent=1 // pred_fallthru
      _
    // Predicated region
    $region74: #{transxnet_srd_training_forward.1} parent=1 // pred_check
      _
    $region75: #{transxnet_srd_training_forward.1} parent=1 // pred_check_branch
      %1626 = sbr.rel (0) target = $region77
    $region76: #{transxnet_srd_training_forward.1} parent=1 // pred_region
      %1627 = dma.done [#allocation4], 16
    $region77: #{transxnet_srd_training_forward.1} parent=1 // pred_fallthru
      _
    %1628 = sfence
    %1629 = vsyncpa [#allocation3], 1
    %1630 = vsyncpa [#allocation4], 1

</llo_original>
